<compile_context>
chip_gen: v5e
topology: v5e:2x2
jax: 0.10.0
libtpu: 0.0.40
codegen_flags: <defaults>
</compile_context>

<pallas_src>
import functools

import numpy as np
import jax
import jax.numpy as jnp
from jax.experimental import pallas as pl
from jax.experimental.pallas import tpu as pltpu


# ----------------------------- host-side glue: mel / filter construction -----------------------------

def _hz_to_mel(f):
    return 2595.0 * np.log10(1.0 + f / 700.0)


def _mel_to_hz(m):
    return 700.0 * (10.0 ** (m / 2595.0) - 1.0)


def mel_frequencies(n_mels, fmin, fmax):
    return _mel_to_hz(np.linspace(_hz_to_mel(fmin), _hz_to_mel(fmax), n_mels))


def lowpass_filter_bank(cutoffs):
    """Replicates dsp.LowPassFilters.__init__ (sinc * hamming window)."""
    width = int(2.0 / min(cutoffs))
    t = np.arange(-width, width + 1, dtype=np.float64)
    n = np.arange(2 * width + 1, dtype=np.float64)
    # torch.hamming_window(2*width+1, periodic=False)
    window = 0.54 - 0.46 * np.cos(2.0 * np.pi * n / (2.0 * width))
    filts = np.stack(
        [2.0 * c * np.sinc(2.0 * c * t) * window for c in cutoffs]
    ).astype(np.float64)  # (2, K), K = 2*width + 1
    return filts, width


def _round_up(x, m):
    return (x + m - 1) // m * m


def _cdiv(a, b):
    return (a + b - 1) // b


# ----------------------------- Pallas kernel -----------------------------

def bandmask_kernel(w_ref, a_ref, h_ref, out_ref, *, tb, halo):
    """Fused BandMask FIR as a blocked banded matmul on the MXU.

    w_ref  : (TB + HALO, TB) f32 VMEM -- banded tap matrix, W[m, c] = combined[m - c]
    a_ref  : (TN, TT)        f32 VMEM -- padded-signal tile j
    h_ref  : (TN, HALO)      f32 VMEM -- first HALO columns of tile j+1 (right halo)
    out_ref: (TN, TT)        f32 VMEM
    """
    tt = out_ref.shape[1]
    nb = tt // tb
    hp = jax.lax.Precision.HIGHEST

    # Interior sub-blocks: the whole (TB + HALO) window lies inside a_ref.
    for b in range(nb - 1):
        base = b * tb
        out_ref[:, base:base + tb] = jnp.dot(
            a_ref[:, base:base + tb + halo], w_ref[...],
            precision=hp, preferred_element_type=jnp.float32)

    # Last sub-block: split the banded matmul across the tile/halo boundary so
    # no stitched VMEM scratch window is ever materialized.
    base = (nb - 1) * tb
    acc = jnp.dot(a_ref[:, base:base + tb], w_ref[:tb, :],
                  precision=hp, preferred_element_type=jnp.float32)
    acc = acc + jnp.dot(h_ref[...], w_ref[tb:tb + halo, :],
                        precision=hp, preferred_element_type=jnp.float32)
    out_ref[:, base:base + tb] = acc


# ----------------------------- wrapper -----------------------------

def band_mask(wav, *, maxwidth=0.2, bands=120, sample_rate=16000,
              low_idx=60, high_idx=75, max_block_t=4096, max_block_n=256):
    """BandMask.forward.

    wav: (B, C, T) float32.
    # TODO(synk): the original picks low/high with host-side random.randrange;
    # here the band indices are fixed deterministically (low_idx/high_idx) and
    # kept inside the valid range [low, min(bands, low + int(maxwidth*bands))).
    """
    bandwidth = int(abs(maxwidth) * bands)
    assert 0 <= low_idx < bands
    assert low_idx <= high_idx < min(bands, low_idx + bandwidth)

    mels = mel_frequencies(bands, 40.0, sample_rate / 2.0) / sample_rate
    filts, width = lowpass_filter_bank([mels[low_idx], mels[high_idx]])
    num_taps = 2 * width + 1

    # Fuse  wav - mid + low  into a single FIR:
    #   combined = (low_taps - mid_taps),  combined[center] += 1.0
    combined = filts[0] - filts[1]
    combined[width] += 1.0

    B, C, T = wav.shape
    N = B * C

    # --- tiling ---
    # HALO covers the K-1 right-halo columns; TB is the MXU time sub-block
    # (output columns produced per matmul).  HALO always divides TB.
    halo = _round_up(max(num_taps - 1, 128), 128)
    tb = max(256, halo)
    assert halo <= tb and tb % halo == 0
    # Guard against pathological filter lengths (tiny cutoffs) blowing up the
    # banded tap matrix; fall back would be the plain-XLA reference.
    assert (tb + halo) * tb * 4 <= (8 << 20), (
        "FIR too long for the banded-matmul Pallas path; use the XLA reference")

    # Banded tap matrix W[m, c] = combined[m - c], shape (TB + HALO, TB).
    w_mat = np.zeros((tb + halo, tb), dtype=np.float64)
    cols = np.arange(tb)
    for k in range(num_taps):
        w_mat[cols + k, cols] = combined[k]
    w_mat = jnp.asarray(w_mat.astype(np.float32))

    # Balanced row tiling (sublane multiple of 8, capped).
    tn = min(_round_up(N, 8), max_block_n)
    n_n_blocks = _cdiv(N, tn)
    tn = _round_up(_cdiv(N, n_n_blocks), 8)
    N_pad = n_n_blocks * tn

    # Balanced time tiling (multiple of TB) to minimize ragged-T padding.
    max_block_t = max(max_block_t, tb)
    n_t_blocks = _cdiv(T, max_block_t)
    tt = _round_up(_cdiv(T, n_t_blocks), tb)
    n_t_blocks = _cdiv(T, tt)
    T_pad = n_t_blocks * tt
    L = T_pad + halo            # padded length incl. right halo of last tile

    # TODO(synk): fold the left `width` / right halo zero-padding into the
    # kernel (pl.when boundary masking) to drop this extra HBM round trip.
    x = wav.reshape(N, T).astype(jnp.float32)
    xpad = jnp.pad(x, ((0, N_pad - N), (width, L - width - T)))

    kernel = functools.partial(bandmask_kernel, tb=tb, halo=halo)

    flops = 2 * N_pad * T_pad * (tb + halo)
    bytes_accessed = 4 * (N_pad * (T_pad + n_t_blocks * halo)   # signal reads
                          + N_pad * T_pad                       # output writes
                          + (tb + halo) * tb)                   # tap matrix

    halo_blocks_per_tile = tt // halo

    out = pl.pallas_call(
        kernel,
        out_shape=jax.ShapeDtypeStruct((N_pad, T_pad), jnp.float32),
        grid=(n_n_blocks, n_t_blocks),
        in_specs=[
            # Banded taps: VMEM-resident, constant block (DMA'd once).
            pl.BlockSpec((tb + halo, tb), lambda i, j: (0, 0)),
            # Signal tile j.
            pl.BlockSpec((tn, tt), lambda i, j: (i, j)),
            # Narrow right halo: first HALO columns of tile j+1.
            pl.BlockSpec((tn, halo),
                         lambda i, j: (i, (j + 1) * halo_blocks_per_tile)),
        ],
        out_specs=pl.BlockSpec((tn, tt), lambda i, j: (i, j)),
        compiler_params=pltpu.CompilerParams(
            dimension_semantics=("parallel", "parallel")),
        cost_estimate=pl.CostEstimate(
            flops=flops, transcendentals=0, bytes_accessed=bytes_accessed),
    )(w_mat, xpad, xpad)

    return out[:N, :T].reshape(B, C, T).astype(wav.dtype)


# ----------------------------- reference (plain JAX, for verification) -----------------------------

def band_mask_reference(wav, *, maxwidth=0.2, bands=120, sample_rate=16000,
                        low_idx=60, high_idx=75):
    mels = mel_frequencies(bands, 40.0, sample_rate / 2.0) / sample_rate
    filts, width = lowpass_filter_bank([mels[low_idx], mels[high_idx]])
    B, C, T = wav.shape
    N = B * C
    x = wav.reshape(N, T).astype(jnp.float32)
    # F.conv1d is cross-correlation; conv_general_dilated matches that.
    conv = jax.lax.conv_general_dilated(
        x[:, None, :], jnp.asarray(filts.astype(np.float32))[:, None, :],
        window_strides=(1,), padding=[(width, width)],
        dimension_numbers=("NCH", "OIH", "NCH"),
        precision=jax.lax.Precision.HIGHEST)   # (N, 2, T)
    low = conv[:, 0]
    mid = conv[:, 1]
    return (x - mid + low).reshape(B, C, T).astype(wav.dtype)


if __name__ == "__main__":
    key = jax.random.PRNGKey(0)
    k1, k2 = jax.random.split(key)

    # Case 1: single T tile (nb == 1 -> halo/split matmul path only), N=4 -> 8 rows.
    wav1 = jax.random.normal(k1, (2, 2, 256), dtype=jnp.float32)
    out1 = jax.block_until_ready(band_mask(wav1))
    ref1 = jax.block_until_ready(band_mask_reference(wav1))
    assert out1.shape == wav1.shape and out1.dtype == wav1.dtype
    np.testing.assert_allclose(np.asarray(out1), np.asarray(ref1), atol=3e-5, rtol=3e-5)

    # Case 2: exercises both grid axes (N=9 -> two 8-row blocks), two T tiles
    # with a real halo crossing, ragged T (balanced tiling), and the interior
    # sub-block matmul loop (TT=768, TB=256 -> nb=3).
    wav2 = jax.random.normal(k2, (3, 3, 1500), dtype=jnp.float32)
    out2 = jax.block_until_ready(band_mask(wav2, max_block_t=1024, max_block_n=8))
    ref2 = jax.block_until_ready(band_mask_reference(wav2))
    assert out2.shape == wav2.shape and out2.dtype == wav2.dtype
    np.testing.assert_allclose(np.asarray(out2), np.asarray(ref2), atol=3e-5, rtol=3e-5)

    print("KERNEL_OK")
</pallas_src>

<mosaic_0001>
module attributes {stable_mosaic.version = 11 : i64} {
  func.func @bandmask_kernel(%arg0: i32, %arg1: i32, %arg2: memref<384x256xf32, #tpu.memory_space<vmem>>, %arg3: memref<8x256xf32, #tpu.memory_space<vmem>>, %arg4: memref<8x128xf32, #tpu.memory_space<vmem>>, %arg5: memref<8x256xf32, #tpu.memory_space<vmem>>) attributes {dimension_semantics = [#tpu.dimension_semantics<parallel>, #tpu.dimension_semantics<parallel>], iteration_bounds = array<i64: 1, 1>, scalar_prefetch = 0 : i64, scratch_operands = 0 : i64, tpu.core_type = #tpu.core_type<tc>, window_params = [{pipeline_mode = #tpu.pipeline_mode<synchronous>, transform_indices = @transform_0, window_bounds = array<i64: 384, 256>}, {transform_indices = @transform_1, window_bounds = array<i64: 8, 256>}, {transform_indices = @transform_2, window_bounds = array<i64: 8, 128>}, {transform_indices = @transform_3, window_bounds = array<i64: 8, 256>}]} {
    %c0 = arith.constant 0 : index
    %c0_0 = arith.constant 0 : index
    %0 = vector.load %arg3[%c0, %c0_0] : memref<8x256xf32, #tpu.memory_space<vmem>>, vector<8x256xf32>
    %c0_1 = arith.constant 0 : index
    %c0_2 = arith.constant 0 : index
    %1 = vector.load %arg2[%c0_1, %c0_2] : memref<384x256xf32, #tpu.memory_space<vmem>>, vector<256x256xf32>
    %cst = arith.constant dense<0.000000e+00> : vector<8x256xf32>
    %2 = tpu.matmul %0, %1, %cst {dimension_numbers = #tpu.dot_dimension_numbers<[1], [0], [0], [1], [0, 0, 1, 1], [], []>, precision = #tpu.contract_precision<fp32>} : vector<8x256xf32>, vector<256x256xf32>, vector<8x256xf32> -> vector<8x256xf32>
    %c0_3 = arith.constant 0 : index
    %c0_4 = arith.constant 0 : index
    %3 = vector.load %arg4[%c0_3, %c0_4] : memref<8x128xf32, #tpu.memory_space<vmem>>, vector<8x128xf32>
    %c256 = arith.constant 256 : index
    %c0_5 = arith.constant 0 : index
    %4 = vector.load %arg2[%c256, %c0_5] : memref<384x256xf32, #tpu.memory_space<vmem>>, vector<128x256xf32>
    %cst_6 = arith.constant dense<0.000000e+00> : vector<8x256xf32>
    %5 = tpu.matmul %3, %4, %cst_6 {dimension_numbers = #tpu.dot_dimension_numbers<[1], [0], [0], [1], [0, 0, 1, 1], [], []>, precision = #tpu.contract_precision<fp32>} : vector<8x128xf32>, vector<128x256xf32>, vector<8x256xf32> -> vector<8x256xf32>
    %6 = arith.addf %2, %5 : vector<8x256xf32>
    %c0_7 = arith.constant 0 : index
    %c0_8 = arith.constant 0 : index
    %7 = vector.load %arg5[%c0_7, %c0_8] : memref<8x256xf32, #tpu.memory_space<vmem>>, vector<8x256xf32>
    tpu.vector_store %arg5[%c0_7, %c0_8], %6 {strides = array<i32>} : memref<8x256xf32, #tpu.memory_space<vmem>>, vector<8x256xf32>,
    return
  }
  func.func @transform_0(%arg0: i32, %arg1: i32) -> (i32, i32) {
    %c0_i32 = arith.constant 0 : i32
    %c0_i32_0 = arith.constant 0 : i32
    %c0_i32_1 = arith.constant 0 : i32
    return %c0_i32, %c0_i32_0 : i32, i32
  }
  func.func @transform_1(%arg0: i32, %arg1: i32) -> (i32, i32) {
    %c0_i32 = arith.constant 0 : i32
    return %arg0, %arg1 : i32, i32
  }
  func.func @transform_2(%arg0: i32, %arg1: i32) -> (i32, i32) {
    %c1_i32 = arith.constant 1 : i32
    %0 = arith.addi %arg1, %c1_i32 : i32
    %c2_i32 = arith.constant 2 : i32
    %1 = arith.muli %0, %c2_i32 : i32
    %c0_i32 = arith.constant 0 : i32
    return %arg0, %1 : i32, i32
  }
  func.func @transform_3(%arg0: i32, %arg1: i32) -> (i32, i32) {
    %c0_i32 = arith.constant 0 : i32
    return %arg0, %arg1 : i32, i32
  }
}

</mosaic_0001>

<llo_original>
// kernel: tpu_custom_call.1
$region0: #{tpu_custom_call.1}
  #allocation0 [shape = 'u32[]', space=smem, size = 0x4, offset = 0x4, fixed_abs, tag = 'smem constant byte address 0x4 - core index']
  #allocation1 [shape = 'u32[72,128]{1,0:T(1,128)}', space=vmem, size = 0x9000, scoped, tag = 'internal scratch']
  %s0 = inlined_call_operand.hbm [shape: f32[384,256], index: 0, kind: input, shape index: {}]
  %s1 = inlined_call_operand.hbm [shape: f32[8,384], index: 1, kind: input, shape index: {}]
  %s2 = inlined_call_operand.hbm [shape: f32[8,384], index: 2, kind: input, shape index: {}]
  %s3 = inlined_call_operand.hbm [shape: f32[8,256], index: 3, kind: output, shape index: {}]
  %s4 = sld [smem:[#allocation0]]
  $region34: #{tpu_custom_call.1} parent=0
    _
  %s6 = ssub.s32 1, %s4
  %s7 = scalar_select 0, %s6, %s4
  $region1: #{tpu_custom_call.1} parent=0
    #allocation2 [shape = 'u8[393216]{0}', space=vmem, size = 0x60000, scoped, tag = 'input window, operand 0, single buffered']
    #allocation3 [shape = 's32[1]{0}', space=sflag, size = 0x4, scoped, tag = 'scoped memory for tpu_custom_call.1']
    #allocation4 [shape = 's32[1]{0}', space=sflag, size = 0x4, scoped, tag = 'scoped memory for tpu_custom_call.1']
    #allocation5 [shape = 'u8[8192]{0}', space=vmem, size = 0x2000, scoped, tag = 'input window, operand 1, single buffered']
    #allocation6 [shape = 's32[1]{0}', space=sflag, size = 0x4, scoped, tag = 'scoped memory for tpu_custom_call.1']
    #allocation7 [shape = 'u8[4096]{0}', space=vmem, size = 0x1000, scoped, tag = 'input window, operand 2, single buffered']
    #allocation8 [shape = 'u8[8192]{0}', space=vmem, size = 0x2000, scoped, tag = 'output window, operand 0, single buffered']
    %8 = vsyncpa [#allocation3], 0
    %9 = vsyncpa [#allocation6], 0
    %10 = vsyncpa [#allocation4], 0
    // Predicated region
    $region2: #{tpu_custom_call.1} parent=1 // pred_check
      _
    $region3: #{tpu_custom_call.1} parent=1 // pred_check_branch
      %12 = sbr.rel (0) target = $region5
    $region4: #{tpu_custom_call.1} parent=1 // pred_region
      %14 = vsyncadd [#allocation3], 0
      %s15 = sshll.u32 %s0, 4
      %s16 = int_to_ptr.hbm [resolvable:$true] %s15
      %s17 = sshll.u32 [#allocation2], 4
      %s18 = int_to_ptr.vmem [resolvable:$true] %s17
      %23 = dma.hbm_to_vmem [thread:$0]  %s16, 12288, %s18, [#allocation3], 256, 256, 16
    $region5: #{tpu_custom_call.1} parent=1 // pred_fallthru
      _
    // Predicated region
    $region6: #{tpu_custom_call.1} parent=1 // pred_check
      _
    $region7: #{tpu_custom_call.1} parent=1 // pred_check_branch
      %25 = sbr.rel (0) target = $region9
    $region8: #{tpu_custom_call.1} parent=1 // pred_region
      %27 = vsyncadd [#allocation6], 0
      %s29 = sshll.u32 %s1, 4
      %s30 = int_to_ptr.hbm [resolvable:$true] %s29
      %s31 = sshll.u32 [#allocation5], 4
      %s32 = int_to_ptr.vmem [resolvable:$true] %s31
      %34 = dma.hbm_to_vmem [thread:$0]  %s30, 256, %s32, [#allocation6]
    $region9: #{tpu_custom_call.1} parent=1 // pred_fallthru
      _
    // Predicated region
    $region10: #{tpu_custom_call.1} parent=1 // pred_check
      _
    $region11: #{tpu_custom_call.1} parent=1 // pred_check_branch
      %36 = sbr.rel (0) target = $region13
    $region12: #{tpu_custom_call.1} parent=1 // pred_region
      %s37 = sadd.s32 0, 1
      %s38 = smul.u32 %s37, 2
      %40 = vsyncadd [#allocation6], 0
      %s41 = smul.addr %s38, 8
      %s42 = scalar_lea.hbm %s2, %s41
      %s44 = sshll.u32 %s42, 4
      %s45 = int_to_ptr.hbm [resolvable:$true] %s44
      %s46 = sshll.u32 [#allocation7], 4
      %s47 = int_to_ptr.vmem [resolvable:$true] %s46
      %49 = dma.hbm_to_vmem [thread:$0]  %s45, 128, %s47, [#allocation6]
    $region13: #{tpu_custom_call.1} parent=1 // pred_fallthru
      _
    // Predicated region
    $region14: #{tpu_custom_call.1} parent=1 // pred_check
      _
    $region15: #{tpu_custom_call.1} parent=1 // pred_check_branch
      %51 = sbr.rel (0) target = $region17
    $region16: #{tpu_custom_call.1} parent=1 // pred_region
      %53 = dma.done [#allocation3], 12288
    $region17: #{tpu_custom_call.1} parent=1 // pred_fallthru
      _
    // Predicated region
    $region18: #{tpu_custom_call.1} parent=1 // pred_check
      _
    $region19: #{tpu_custom_call.1} parent=1 // pred_check_branch
      %55 = sbr.rel (0) target = $region21
    $region20: #{tpu_custom_call.1} parent=1 // pred_region
      %57 = dma.done [#allocation6], 256
    $region21: #{tpu_custom_call.1} parent=1 // pred_fallthru
      _
    // Predicated region
    $region22: #{tpu_custom_call.1} parent=1 // pred_check
      _
    $region23: #{tpu_custom_call.1} parent=1 // pred_check_branch
      %59 = sbr.rel (0) target = $region25
    $region24: #{tpu_custom_call.1} parent=1 // pred_region
      %61 = dma.done [#allocation6], 128
    $region25: #{tpu_custom_call.1} parent=1 // pred_fallthru
      _
    %s62 = sadd.s32 0, 1
    %s63 = smul.u32 %s62, 2
    %v64 = vld [vmem:[#allocation5] sm:$0xff]
    %v65 = vld [vmem:[#allocation5 + $0x8] sm:$0xff]
    %v66 = vld [vmem:[#allocation2] sm:$0xff]
    %v67 = vld [vmem:[#allocation2 + $0x8] sm:$0xff]
    %v68 = vld [vmem:[#allocation2 + $0x10] sm:$0xff]
    %v69 = vld [vmem:[#allocation2 + $0x18] sm:$0xff]
    %v70 = vld [vmem:[#allocation2 + $0x20] sm:$0xff]
    %v71 = vld [vmem:[#allocation2 + $0x28] sm:$0xff]
    %v72 = vld [vmem:[#allocation2 + $0x30] sm:$0xff]
    %v73 = vld [vmem:[#allocation2 + $0x38] sm:$0xff]
    %v74 = vld [vmem:[#allocation2 + $0x40] sm:$0xff]
    %v75 = vld [vmem:[#allocation2 + $0x48] sm:$0xff]
    %v76 = vld [vmem:[#allocation2 + $0x50] sm:$0xff]
    %v77 = vld [vmem:[#allocation2 + $0x58] sm:$0xff]
    %v78 = vld [vmem:[#allocation2 + $0x60] sm:$0xff]
    %v79 = vld [vmem:[#allocation2 + $0x68] sm:$0xff]
    %v80 = vld [vmem:[#allocation2 + $0x70] sm:$0xff]
    %v81 = vld [vmem:[#allocation2 + $0x78] sm:$0xff]
    %v82 = vld [vmem:[#allocation2 + $0x80] sm:$0xff]
    %v83 = vld [vmem:[#allocation2 + $0x88] sm:$0xff]
    %v84 = vld [vmem:[#allocation2 + $0x90] sm:$0xff]
    %v85 = vld [vmem:[#allocation2 + $0x98] sm:$0xff]
    %v86 = vld [vmem:[#allocation2 + $0xa0] sm:$0xff]
    %v87 = vld [vmem:[#allocation2 + $0xa8] sm:$0xff]
    %v88 = vld [vmem:[#allocation2 + $0xb0] sm:$0xff]
    %v89 = vld [vmem:[#allocation2 + $0xb8] sm:$0xff]
    %v90 = vld [vmem:[#allocation2 + $0xc0] sm:$0xff]
    %v91 = vld [vmem:[#allocation2 + $0xc8] sm:$0xff]
    %v92 = vld [vmem:[#allocation2 + $0xd0] sm:$0xff]
    %v93 = vld [vmem:[#allocation2 + $0xd8] sm:$0xff]
    %v94 = vld [vmem:[#allocation2 + $0xe0] sm:$0xff]
    %v95 = vld [vmem:[#allocation2 + $0xe8] sm:$0xff]
    %v96 = vld [vmem:[#allocation2 + $0xf0] sm:$0xff]
    %v97 = vld [vmem:[#allocation2 + $0xf8] sm:$0xff]
    %v98 = vld [vmem:[#allocation2 + $0x100] sm:$0xff]
    %v99 = vld [vmem:[#allocation2 + $0x108] sm:$0xff]
    %v100 = vld [vmem:[#allocation2 + $0x110] sm:$0xff]
    %v101 = vld [vmem:[#allocation2 + $0x118] sm:$0xff]
    %v102 = vld [vmem:[#allocation2 + $0x120] sm:$0xff]
    %v103 = vld [vmem:[#allocation2 + $0x128] sm:$0xff]
    %v104 = vld [vmem:[#allocation2 + $0x130] sm:$0xff]
    %v105 = vld [vmem:[#allocation2 + $0x138] sm:$0xff]
    %v106 = vld [vmem:[#allocation2 + $0x140] sm:$0xff]
    %v107 = vld [vmem:[#allocation2 + $0x148] sm:$0xff]
    %v108 = vld [vmem:[#allocation2 + $0x150] sm:$0xff]
    %v109 = vld [vmem:[#allocation2 + $0x158] sm:$0xff]
    %v110 = vld [vmem:[#allocation2 + $0x160] sm:$0xff]
    %v111 = vld [vmem:[#allocation2 + $0x168] sm:$0xff]
    %v112 = vld [vmem:[#allocation2 + $0x170] sm:$0xff]
    %v113 = vld [vmem:[#allocation2 + $0x178] sm:$0xff]
    %v114 = vld [vmem:[#allocation2 + $0x180] sm:$0xff]
    %v115 = vld [vmem:[#allocation2 + $0x188] sm:$0xff]
    %v116 = vld [vmem:[#allocation2 + $0x190] sm:$0xff]
    %v117 = vld [vmem:[#allocation2 + $0x198] sm:$0xff]
    %v118 = vld [vmem:[#allocation2 + $0x1a0] sm:$0xff]
    %v119 = vld [vmem:[#allocation2 + $0x1a8] sm:$0xff]
    %v120 = vld [vmem:[#allocation2 + $0x1b0] sm:$0xff]
    %v121 = vld [vmem:[#allocation2 + $0x1b8] sm:$0xff]
    %v122 = vld [vmem:[#allocation2 + $0x1c0] sm:$0xff]
    %v123 = vld [vmem:[#allocation2 + $0x1c8] sm:$0xff]
    %v124 = vld [vmem:[#allocation2 + $0x1d0] sm:$0xff]
    %v125 = vld [vmem:[#allocation2 + $0x1d8] sm:$0xff]
    %v126 = vld [vmem:[#allocation2 + $0x1e0] sm:$0xff]
    %v127 = vld [vmem:[#allocation2 + $0x1e8] sm:$0xff]
    %v128 = vld [vmem:[#allocation2 + $0x1f0] sm:$0xff]
    %v129 = vld [vmem:[#allocation2 + $0x1f8] sm:$0xff]
    %v130 = vld [vmem:[#allocation7] sm:$0xff]
    %v131 = vld [vmem:[#allocation2 + $0x200] sm:$0xff]
    %v132 = vld [vmem:[#allocation2 + $0x208] sm:$0xff]
    %v133 = vld [vmem:[#allocation2 + $0x210] sm:$0xff]
    %v134 = vld [vmem:[#allocation2 + $0x218] sm:$0xff]
    %v135 = vld [vmem:[#allocation2 + $0x220] sm:$0xff]
    %v136 = vld [vmem:[#allocation2 + $0x228] sm:$0xff]
    %v137 = vld [vmem:[#allocation2 + $0x230] sm:$0xff]
    %v138 = vld [vmem:[#allocation2 + $0x238] sm:$0xff]
    %v139 = vld [vmem:[#allocation2 + $0x240] sm:$0xff]
    %v140 = vld [vmem:[#allocation2 + $0x248] sm:$0xff]
    %v141 = vld [vmem:[#allocation2 + $0x250] sm:$0xff]
    %v142 = vld [vmem:[#allocation2 + $0x258] sm:$0xff]
    %v143 = vld [vmem:[#allocation2 + $0x260] sm:$0xff]
    %v144 = vld [vmem:[#allocation2 + $0x268] sm:$0xff]
    %v145 = vld [vmem:[#allocation2 + $0x270] sm:$0xff]
    %v146 = vld [vmem:[#allocation2 + $0x278] sm:$0xff]
    %v147 = vld [vmem:[#allocation2 + $0x280] sm:$0xff]
    %v148 = vld [vmem:[#allocation2 + $0x288] sm:$0xff]
    %v149 = vld [vmem:[#allocation2 + $0x290] sm:$0xff]
    %v150 = vld [vmem:[#allocation2 + $0x298] sm:$0xff]
    %v151 = vld [vmem:[#allocation2 + $0x2a0] sm:$0xff]
    %v152 = vld [vmem:[#allocation2 + $0x2a8] sm:$0xff]
    %v153 = vld [vmem:[#allocation2 + $0x2b0] sm:$0xff]
    %v154 = vld [vmem:[#allocation2 + $0x2b8] sm:$0xff]
    %v155 = vld [vmem:[#allocation2 + $0x2c0] sm:$0xff]
    %v156 = vld [vmem:[#allocation2 + $0x2c8] sm:$0xff]
    %v157 = vld [vmem:[#allocation2 + $0x2d0] sm:$0xff]
    %v158 = vld [vmem:[#allocation2 + $0x2d8] sm:$0xff]
    %v159 = vld [vmem:[#allocation2 + $0x2e0] sm:$0xff]
    %v160 = vld [vmem:[#allocation2 + $0x2e8] sm:$0xff]
    %v161 = vld [vmem:[#allocation2 + $0x2f0] sm:$0xff]
    %v162 = vld [vmem:[#allocation2 + $0x2f8] sm:$0xff]
    %v163 = vand.u32 %v161, 4294901760
    %164 = vmatpush.msra.mxu0 %v163
    %v165 = vand.u32 %v159, 4294901760
    %166 = vmatpush.msra.mxu0 %v165
    %v167 = vand.u32 %v157, 4294901760
    %168 = vmatpush.msra.mxu0 %v167
    %v169 = vand.u32 %v155, 4294901760
    %170 = vmatpush.msra.mxu0 %v169
    %v171 = vand.u32 %v153, 4294901760
    %172 = vmatpush.msra.mxu0 %v171
    %v173 = vand.u32 %v151, 4294901760
    %174 = vmatpush.msra.mxu0 %v173
    %v175 = vand.u32 %v149, 4294901760
    %176 = vmatpush.msra.mxu0 %v175
    %v177 = vand.u32 %v147, 4294901760
    %178 = vmatpush.msra.mxu0 %v177
    %v179 = vand.u32 %v145, 4294901760
    %180 = vmatpush.msra.mxu0 %v179
    %v181 = vand.u32 %v143, 4294901760
    %182 = vmatpush.msra.mxu0 %v181
    %v183 = vand.u32 %v141, 4294901760
    %184 = vmatpush.msra.mxu0 %v183
    %v185 = vand.u32 %v139, 4294901760
    %186 = vmatpush.msra.mxu0 %v185
    %v187 = vand.u32 %v137, 4294901760
    %188 = vmatpush.msra.mxu0 %v187
    %v189 = vand.u32 %v135, 4294901760
    %190 = vmatpush.msra.mxu0 %v189
    %v191 = vand.u32 %v133, 4294901760
    %192 = vmatpush.msra.mxu0 %v191
    %v193 = vand.u32 %v131, 4294901760
    %194 = vmatpush.msra.mxu0 %v193
    %v195 = vand.u32 %v130, 4294901760
    %v196 = vsub.f32 %v130, %v195
    %v197 = vand.u32 %v196, 4294901760
    %v198 = vsub.f32 %v196, %v197
    %v199 = vand.u32 %v198, 4294901760
    %200 = vmatmul.f32.gmra.mxu0 %v199
    %v201 = vpop.f32.mrf.mxu0
    %v202 = vadd.f32 0.0, %v201
    %203 = vdwg.mxu0
    %v204 = vand.u32 %v161, 4294901760
    %v205 = vsub.f32 %v161, %v204
    %v206 = vand.u32 %v205, 4294901760
    %v207 = vsub.f32 %v205, %v206
    %v208 = vand.u32 %v207, 4294901760
    %209 = vmatpush.msra.mxu0 %v208
    %v210 = vand.u32 %v159, 4294901760
    %v211 = vsub.f32 %v159, %v210
    %v212 = vand.u32 %v211, 4294901760
    %v213 = vsub.f32 %v211, %v212
    %v214 = vand.u32 %v213, 4294901760
    %215 = vmatpush.msra.mxu0 %v214
    %v216 = vand.u32 %v157, 4294901760
    %v217 = vsub.f32 %v157, %v216
    %v218 = vand.u32 %v217, 4294901760
    %v219 = vsub.f32 %v217, %v218
    %v220 = vand.u32 %v219, 4294901760
    %221 = vmatpush.msra.mxu0 %v220
    %v222 = vand.u32 %v155, 4294901760
    %v223 = vsub.f32 %v155, %v222
    %v224 = vand.u32 %v223, 4294901760
    %v225 = vsub.f32 %v223, %v224
    %v226 = vand.u32 %v225, 4294901760
    %227 = vmatpush.msra.mxu0 %v226
    %v228 = vand.u32 %v153, 4294901760
    %v229 = vsub.f32 %v153, %v228
    %v230 = vand.u32 %v229, 4294901760
    %v231 = vsub.f32 %v229, %v230
    %v232 = vand.u32 %v231, 4294901760
    %233 = vmatpush.msra.mxu0 %v232
    %v234 = vand.u32 %v151, 4294901760
    %v235 = vsub.f32 %v151, %v234
    %v236 = vand.u32 %v235, 4294901760
    %v237 = vsub.f32 %v235, %v236
    %v238 = vand.u32 %v237, 4294901760
    %239 = vmatpush.msra.mxu0 %v238
    %v240 = vand.u32 %v149, 4294901760
    %v241 = vsub.f32 %v149, %v240
    %v242 = vand.u32 %v241, 4294901760
    %v243 = vsub.f32 %v241, %v242
    %v244 = vand.u32 %v243, 4294901760
    %245 = vmatpush.msra.mxu0 %v244
    %v246 = vand.u32 %v147, 4294901760
    %v247 = vsub.f32 %v147, %v246
    %v248 = vand.u32 %v247, 4294901760
    %v249 = vsub.f32 %v247, %v248
    %v250 = vand.u32 %v249, 4294901760
    %251 = vmatpush.msra.mxu0 %v250
    %v252 = vand.u32 %v145, 4294901760
    %v253 = vsub.f32 %v145, %v252
    %v254 = vand.u32 %v253, 4294901760
    %v255 = vsub.f32 %v253, %v254
    %v256 = vand.u32 %v255, 4294901760
    %257 = vmatpush.msra.mxu0 %v256
    %v258 = vand.u32 %v143, 4294901760
    %v259 = vsub.f32 %v143, %v258
    %v260 = vand.u32 %v259, 4294901760
    %v261 = vsub.f32 %v259, %v260
    %v262 = vand.u32 %v261, 4294901760
    %263 = vmatpush.msra.mxu0 %v262
    %v264 = vand.u32 %v141, 4294901760
    %v265 = vsub.f32 %v141, %v264
    %v266 = vand.u32 %v265, 4294901760
    %v267 = vsub.f32 %v265, %v266
    %v268 = vand.u32 %v267, 4294901760
    %269 = vmatpush.msra.mxu0 %v268
    %v270 = vand.u32 %v139, 4294901760
    %v271 = vsub.f32 %v139, %v270
    %v272 = vand.u32 %v271, 4294901760
    %v273 = vsub.f32 %v271, %v272
    %v274 = vand.u32 %v273, 4294901760
    %275 = vmatpush.msra.mxu0 %v274
    %v276 = vand.u32 %v137, 4294901760
    %v277 = vsub.f32 %v137, %v276
    %v278 = vand.u32 %v277, 4294901760
    %v279 = vsub.f32 %v277, %v278
    %v280 = vand.u32 %v279, 4294901760
    %281 = vmatpush.msra.mxu0 %v280
    %v282 = vand.u32 %v135, 4294901760
    %v283 = vsub.f32 %v135, %v282
    %v284 = vand.u32 %v283, 4294901760
    %v285 = vsub.f32 %v283, %v284
    %v286 = vand.u32 %v285, 4294901760
    %287 = vmatpush.msra.mxu0 %v286
    %v288 = vand.u32 %v133, 4294901760
    %v289 = vsub.f32 %v133, %v288
    %v290 = vand.u32 %v289, 4294901760
    %v291 = vsub.f32 %v289, %v290
    %v292 = vand.u32 %v291, 4294901760
    %293 = vmatpush.msra.mxu0 %v292
    %v294 = vand.u32 %v131, 4294901760
    %v295 = vsub.f32 %v131, %v294
    %v296 = vand.u32 %v295, 4294901760
    %v297 = vsub.f32 %v295, %v296
    %v298 = vand.u32 %v297, 4294901760
    %299 = vmatpush.msra.mxu0 %v298
    %v300 = vand.u32 %v130, 4294901760
    %301 = vmatmul.f32.gmra.mxu0 %v300
    %v302 = vpop.f32.mrf.mxu0
    %v303 = vadd.f32 %v202, %v302
    %304 = vdwg.mxu0
    %v305 = vand.u32 %v161, 4294901760
    %v306 = vsub.f32 %v161, %v305
    %307 = vmatpush.msra.mxu0 %v306
    %v308 = vand.u32 %v159, 4294901760
    %v309 = vsub.f32 %v159, %v308
    %310 = vmatpush.msra.mxu0 %v309
    %v311 = vand.u32 %v157, 4294901760
    %v312 = vsub.f32 %v157, %v311
    %313 = vmatpush.msra.mxu0 %v312
    %v314 = vand.u32 %v155, 4294901760
    %v315 = vsub.f32 %v155, %v314
    %316 = vmatpush.msra.mxu0 %v315
    %v317 = vand.u32 %v153, 4294901760
    %v318 = vsub.f32 %v153, %v317
    %319 = vmatpush.msra.mxu0 %v318
    %v320 = vand.u32 %v151, 4294901760
    %v321 = vsub.f32 %v151, %v320
    %322 = vmatpush.msra.mxu0 %v321
    %v323 = vand.u32 %v149, 4294901760
    %v324 = vsub.f32 %v149, %v323
    %325 = vmatpush.msra.mxu0 %v324
    %v326 = vand.u32 %v147, 4294901760
    %v327 = vsub.f32 %v147, %v326
    %328 = vmatpush.msra.mxu0 %v327
    %v329 = vand.u32 %v145, 4294901760
    %v330 = vsub.f32 %v145, %v329
    %331 = vmatpush.msra.mxu0 %v330
    %v332 = vand.u32 %v143, 4294901760
    %v333 = vsub.f32 %v143, %v332
    %334 = vmatpush.msra.mxu0 %v333
    %v335 = vand.u32 %v141, 4294901760
    %v336 = vsub.f32 %v141, %v335
    %337 = vmatpush.msra.mxu0 %v336
    %v338 = vand.u32 %v139, 4294901760
    %v339 = vsub.f32 %v139, %v338
    %340 = vmatpush.msra.mxu0 %v339
    %v341 = vand.u32 %v137, 4294901760
    %v342 = vsub.f32 %v137, %v341
    %343 = vmatpush.msra.mxu0 %v342
    %v344 = vand.u32 %v135, 4294901760
    %v345 = vsub.f32 %v135, %v344
    %346 = vmatpush.msra.mxu0 %v345
    %v347 = vand.u32 %v133, 4294901760
    %v348 = vsub.f32 %v133, %v347
    %349 = vmatpush.msra.mxu0 %v348
    %v350 = vand.u32 %v131, 4294901760
    %v351 = vsub.f32 %v131, %v350
    %352 = vmatpush.msra.mxu0 %v351
    %v353 = vand.u32 %v130, 4294901760
    %v354 = vsub.f32 %v130, %v353
    %355 = vmatmul.f32.gmra.mxu0 %v354
    %v356 = vpop.f32.mrf.mxu0
    %v357 = vadd.f32 %v303, %v356
    %358 = vdwg.mxu0
    %v359 = vand.u32 %v161, 4294901760
    %360 = vmatpush.msra.mxu0 %v359
    %v361 = vand.u32 %v159, 4294901760
    %362 = vmatpush.msra.mxu0 %v361
    %v363 = vand.u32 %v157, 4294901760
    %364 = vmatpush.msra.mxu0 %v363
    %v365 = vand.u32 %v155, 4294901760
    %366 = vmatpush.msra.mxu0 %v365
    %v367 = vand.u32 %v153, 4294901760
    %368 = vmatpush.msra.mxu0 %v367
    %v369 = vand.u32 %v151, 4294901760
    %370 = vmatpush.msra.mxu0 %v369
    %v371 = vand.u32 %v149, 4294901760
    %372 = vmatpush.msra.mxu0 %v371
    %v373 = vand.u32 %v147, 4294901760
    %374 = vmatpush.msra.mxu0 %v373
    %v375 = vand.u32 %v145, 4294901760
    %376 = vmatpush.msra.mxu0 %v375
    %v377 = vand.u32 %v143, 4294901760
    %378 = vmatpush.msra.mxu0 %v377
    %v379 = vand.u32 %v141, 4294901760
    %380 = vmatpush.msra.mxu0 %v379
    %v381 = vand.u32 %v139, 4294901760
    %382 = vmatpush.msra.mxu0 %v381
    %v383 = vand.u32 %v137, 4294901760
    %384 = vmatpush.msra.mxu0 %v383
    %v385 = vand.u32 %v135, 4294901760
    %386 = vmatpush.msra.mxu0 %v385
    %v387 = vand.u32 %v133, 4294901760
    %388 = vmatpush.msra.mxu0 %v387
    %v389 = vand.u32 %v131, 4294901760
    %390 = vmatpush.msra.mxu0 %v389
    %v391 = vand.u32 %v130, 4294901760
    %v392 = vsub.f32 %v130, %v391
    %v393 = vand.u32 %v392, 4294901760
    %394 = vmatmul.f32.gmra.mxu0 %v393
    %v395 = vpop.f32.mrf.mxu0
    %v396 = vadd.f32 %v357, %v395
    %397 = vdwg.mxu0
    %v398 = vand.u32 %v161, 4294901760
    %v399 = vsub.f32 %v161, %v398
    %v400 = vand.u32 %v399, 4294901760
    %401 = vmatpush.msra.mxu0 %v400
    %v402 = vand.u32 %v159, 4294901760
    %v403 = vsub.f32 %v159, %v402
    %v404 = vand.u32 %v403, 4294901760
    %405 = vmatpush.msra.mxu0 %v404
    %v406 = vand.u32 %v157, 4294901760
    %v407 = vsub.f32 %v157, %v406
    %v408 = vand.u32 %v407, 4294901760
    %409 = vmatpush.msra.mxu0 %v408
    %v410 = vand.u32 %v155, 4294901760
    %v411 = vsub.f32 %v155, %v410
    %v412 = vand.u32 %v411, 4294901760
    %413 = vmatpush.msra.mxu0 %v412
    %v414 = vand.u32 %v153, 4294901760
    %v415 = vsub.f32 %v153, %v414
    %v416 = vand.u32 %v415, 4294901760
    %417 = vmatpush.msra.mxu0 %v416
    %v418 = vand.u32 %v151, 4294901760
    %v419 = vsub.f32 %v151, %v418
    %v420 = vand.u32 %v419, 4294901760
    %421 = vmatpush.msra.mxu0 %v420
    %v422 = vand.u32 %v149, 4294901760
    %v423 = vsub.f32 %v149, %v422
    %v424 = vand.u32 %v423, 4294901760
    %425 = vmatpush.msra.mxu0 %v424
    %v426 = vand.u32 %v147, 4294901760
    %v427 = vsub.f32 %v147, %v426
    %v428 = vand.u32 %v427, 4294901760
    %429 = vmatpush.msra.mxu0 %v428
    %v430 = vand.u32 %v145, 4294901760
    %v431 = vsub.f32 %v145, %v430
    %v432 = vand.u32 %v431, 4294901760
    %433 = vmatpush.msra.mxu0 %v432
    %v434 = vand.u32 %v143, 4294901760
    %v435 = vsub.f32 %v143, %v434
    %v436 = vand.u32 %v435, 4294901760
    %437 = vmatpush.msra.mxu0 %v436
    %v438 = vand.u32 %v141, 4294901760
    %v439 = vsub.f32 %v141, %v438
    %v440 = vand.u32 %v439, 4294901760
    %441 = vmatpush.msra.mxu0 %v440
    %v442 = vand.u32 %v139, 4294901760
    %v443 = vsub.f32 %v139, %v442
    %v444 = vand.u32 %v443, 4294901760
    %445 = vmatpush.msra.mxu0 %v444
    %v446 = vand.u32 %v137, 4294901760
    %v447 = vsub.f32 %v137, %v446
    %v448 = vand.u32 %v447, 4294901760
    %449 = vmatpush.msra.mxu0 %v448
    %v450 = vand.u32 %v135, 4294901760
    %v451 = vsub.f32 %v135, %v450
    %v452 = vand.u32 %v451, 4294901760
    %453 = vmatpush.msra.mxu0 %v452
    %v454 = vand.u32 %v133, 4294901760
    %v455 = vsub.f32 %v133, %v454
    %v456 = vand.u32 %v455, 4294901760
    %457 = vmatpush.msra.mxu0 %v456
    %v458 = vand.u32 %v131, 4294901760
    %v459 = vsub.f32 %v131, %v458
    %v460 = vand.u32 %v459, 4294901760
    %461 = vmatpush.msra.mxu0 %v460
    %v462 = vand.u32 %v130, 4294901760
    %463 = vmatmul.f32.gmra.mxu0 %v462
    %v464 = vpop.f32.mrf.mxu0
    %v465 = vadd.f32 %v396, %v464
    %466 = vdwg.mxu0
    %v467 = vand.u32 %v161, 4294901760
    %468 = vmatpush.msra.mxu0 %v467
    %v469 = vand.u32 %v159, 4294901760
    %470 = vmatpush.msra.mxu0 %v469
    %v471 = vand.u32 %v157, 4294901760
    %472 = vmatpush.msra.mxu0 %v471
    %v473 = vand.u32 %v155, 4294901760
    %474 = vmatpush.msra.mxu0 %v473
    %v475 = vand.u32 %v153, 4294901760
    %476 = vmatpush.msra.mxu0 %v475
    %v477 = vand.u32 %v151, 4294901760
    %478 = vmatpush.msra.mxu0 %v477
    %v479 = vand.u32 %v149, 4294901760
    %480 = vmatpush.msra.mxu0 %v479
    %v481 = vand.u32 %v147, 4294901760
    %482 = vmatpush.msra.mxu0 %v481
    %v483 = vand.u32 %v145, 4294901760
    %484 = vmatpush.msra.mxu0 %v483
    %v485 = vand.u32 %v143, 4294901760
    %486 = vmatpush.msra.mxu0 %v485
    %v487 = vand.u32 %v141, 4294901760
    %488 = vmatpush.msra.mxu0 %v487
    %v489 = vand.u32 %v139, 4294901760
    %490 = vmatpush.msra.mxu0 %v489
    %v491 = vand.u32 %v137, 4294901760
    %492 = vmatpush.msra.mxu0 %v491
    %v493 = vand.u32 %v135, 4294901760
    %494 = vmatpush.msra.mxu0 %v493
    %v495 = vand.u32 %v133, 4294901760
    %496 = vmatpush.msra.mxu0 %v495
    %v497 = vand.u32 %v131, 4294901760
    %498 = vmatpush.msra.mxu0 %v497
    %v499 = vand.u32 %v130, 4294901760
    %500 = vmatmul.f32.gmra.mxu0 %v499
    %v501 = vpop.f32.mrf.mxu0
    %v502 = vadd.f32 %v465, %v501
    %503 = vdwg.mxu0
    %v504 = vand.u32 %v162, 4294901760
    %505 = vmatpush.msra.mxu0 %v504
    %v506 = vand.u32 %v160, 4294901760
    %507 = vmatpush.msra.mxu0 %v506
    %v508 = vand.u32 %v158, 4294901760
    %509 = vmatpush.msra.mxu0 %v508
    %v510 = vand.u32 %v156, 4294901760
    %511 = vmatpush.msra.mxu0 %v510
    %v512 = vand.u32 %v154, 4294901760
    %513 = vmatpush.msra.mxu0 %v512
    %v514 = vand.u32 %v152, 4294901760
    %515 = vmatpush.msra.mxu0 %v514
    %v516 = vand.u32 %v150, 4294901760
    %517 = vmatpush.msra.mxu0 %v516
    %v518 = vand.u32 %v148, 4294901760
    %519 = vmatpush.msra.mxu0 %v518
    %v520 = vand.u32 %v146, 4294901760
    %521 = vmatpush.msra.mxu0 %v520
    %v522 = vand.u32 %v144, 4294901760
    %523 = vmatpush.msra.mxu0 %v522
    %v524 = vand.u32 %v142, 4294901760
    %525 = vmatpush.msra.mxu0 %v524
    %v526 = vand.u32 %v140, 4294901760
    %527 = vmatpush.msra.mxu0 %v526
    %v528 = vand.u32 %v138, 4294901760
    %529 = vmatpush.msra.mxu0 %v528
    %v530 = vand.u32 %v136, 4294901760
    %531 = vmatpush.msra.mxu0 %v530
    %v532 = vand.u32 %v134, 4294901760
    %533 = vmatpush.msra.mxu0 %v532
    %v534 = vand.u32 %v132, 4294901760
    %535 = vmatpush.msra.mxu0 %v534
    %v536 = vand.u32 %v130, 4294901760
    %v537 = vsub.f32 %v130, %v536
    %v538 = vand.u32 %v537, 4294901760
    %v539 = vsub.f32 %v537, %v538
    %v540 = vand.u32 %v539, 4294901760
    %541 = vmatmul.f32.gmra.mxu0 %v540
    %v542 = vpop.f32.mrf.mxu0
    %v543 = vadd.f32 0.0, %v542
    %544 = vdwg.mxu0
    %v545 = vand.u32 %v162, 4294901760
    %v546 = vsub.f32 %v162, %v545
    %v547 = vand.u32 %v546, 4294901760
    %v548 = vsub.f32 %v546, %v547
    %v549 = vand.u32 %v548, 4294901760
    %550 = vmatpush.msra.mxu0 %v549
    %v551 = vand.u32 %v160, 4294901760
    %v552 = vsub.f32 %v160, %v551
    %v553 = vand.u32 %v552, 4294901760
    %v554 = vsub.f32 %v552, %v553
    %v555 = vand.u32 %v554, 4294901760
    %556 = vmatpush.msra.mxu0 %v555
    %v557 = vand.u32 %v158, 4294901760
    %v558 = vsub.f32 %v158, %v557
    %v559 = vand.u32 %v558, 4294901760
    %v560 = vsub.f32 %v558, %v559
    %v561 = vand.u32 %v560, 4294901760
    %562 = vmatpush.msra.mxu0 %v561
    %v563 = vand.u32 %v156, 4294901760
    %v564 = vsub.f32 %v156, %v563
    %v565 = vand.u32 %v564, 4294901760
    %v566 = vsub.f32 %v564, %v565
    %v567 = vand.u32 %v566, 4294901760
    %568 = vmatpush.msra.mxu0 %v567
    %v569 = vand.u32 %v154, 4294901760
    %v570 = vsub.f32 %v154, %v569
    %v571 = vand.u32 %v570, 4294901760
    %v572 = vsub.f32 %v570, %v571
    %v573 = vand.u32 %v572, 4294901760
    %574 = vmatpush.msra.mxu0 %v573
    %v575 = vand.u32 %v152, 4294901760
    %v576 = vsub.f32 %v152, %v575
    %v577 = vand.u32 %v576, 4294901760
    %v578 = vsub.f32 %v576, %v577
    %v579 = vand.u32 %v578, 4294901760
    %580 = vmatpush.msra.mxu0 %v579
    %v581 = vand.u32 %v150, 4294901760
    %v582 = vsub.f32 %v150, %v581
    %v583 = vand.u32 %v582, 4294901760
    %v584 = vsub.f32 %v582, %v583
    %v585 = vand.u32 %v584, 4294901760
    %586 = vmatpush.msra.mxu0 %v585
    %v587 = vand.u32 %v148, 4294901760
    %v588 = vsub.f32 %v148, %v587
    %v589 = vand.u32 %v588, 4294901760
    %v590 = vsub.f32 %v588, %v589
    %v591 = vand.u32 %v590, 4294901760
    %592 = vmatpush.msra.mxu0 %v591
    %v593 = vand.u32 %v146, 4294901760
    %v594 = vsub.f32 %v146, %v593
    %v595 = vand.u32 %v594, 4294901760
    %v596 = vsub.f32 %v594, %v595
    %v597 = vand.u32 %v596, 4294901760
    %598 = vmatpush.msra.mxu0 %v597
    %v599 = vand.u32 %v144, 4294901760
    %v600 = vsub.f32 %v144, %v599
    %v601 = vand.u32 %v600, 4294901760
    %v602 = vsub.f32 %v600, %v601
    %v603 = vand.u32 %v602, 4294901760
    %604 = vmatpush.msra.mxu0 %v603
    %v605 = vand.u32 %v142, 4294901760
    %v606 = vsub.f32 %v142, %v605
    %v607 = vand.u32 %v606, 4294901760
    %v608 = vsub.f32 %v606, %v607
    %v609 = vand.u32 %v608, 4294901760
    %610 = vmatpush.msra.mxu0 %v609
    %v611 = vand.u32 %v140, 4294901760
    %v612 = vsub.f32 %v140, %v611
    %v613 = vand.u32 %v612, 4294901760
    %v614 = vsub.f32 %v612, %v613
    %v615 = vand.u32 %v614, 4294901760
    %616 = vmatpush.msra.mxu0 %v615
    %v617 = vand.u32 %v138, 4294901760
    %v618 = vsub.f32 %v138, %v617
    %v619 = vand.u32 %v618, 4294901760
    %v620 = vsub.f32 %v618, %v619
    %v621 = vand.u32 %v620, 4294901760
    %622 = vmatpush.msra.mxu0 %v621
    %v623 = vand.u32 %v136, 4294901760
    %v624 = vsub.f32 %v136, %v623
    %v625 = vand.u32 %v624, 4294901760
    %v626 = vsub.f32 %v624, %v625
    %v627 = vand.u32 %v626, 4294901760
    %628 = vmatpush.msra.mxu0 %v627
    %v629 = vand.u32 %v134, 4294901760
    %v630 = vsub.f32 %v134, %v629
    %v631 = vand.u32 %v630, 4294901760
    %v632 = vsub.f32 %v630, %v631
    %v633 = vand.u32 %v632, 4294901760
    %634 = vmatpush.msra.mxu0 %v633
    %v635 = vand.u32 %v132, 4294901760
    %v636 = vsub.f32 %v132, %v635
    %v637 = vand.u32 %v636, 4294901760
    %v638 = vsub.f32 %v636, %v637
    %v639 = vand.u32 %v638, 4294901760
    %640 = vmatpush.msra.mxu0 %v639
    %v641 = vand.u32 %v130, 4294901760
    %642 = vmatmul.f32.gmra.mxu0 %v641
    %v643 = vpop.f32.mrf.mxu0
    %v644 = vadd.f32 %v543, %v643
    %645 = vdwg.mxu0
    %v646 = vand.u32 %v162, 4294901760
    %v647 = vsub.f32 %v162, %v646
    %648 = vmatpush.msra.mxu0 %v647
    %v649 = vand.u32 %v160, 4294901760
    %v650 = vsub.f32 %v160, %v649
    %651 = vmatpush.msra.mxu0 %v650
    %v652 = vand.u32 %v158, 4294901760
    %v653 = vsub.f32 %v158, %v652
    %654 = vmatpush.msra.mxu0 %v653
    %v655 = vand.u32 %v156, 4294901760
    %v656 = vsub.f32 %v156, %v655
    %657 = vmatpush.msra.mxu0 %v656
    %v658 = vand.u32 %v154, 4294901760
    %v659 = vsub.f32 %v154, %v658
    %660 = vmatpush.msra.mxu0 %v659
    %v661 = vand.u32 %v152, 4294901760
    %v662 = vsub.f32 %v152, %v661
    %663 = vmatpush.msra.mxu0 %v662
    %v664 = vand.u32 %v150, 4294901760
    %v665 = vsub.f32 %v150, %v664
    %666 = vmatpush.msra.mxu0 %v665
    %v667 = vand.u32 %v148, 4294901760
    %v668 = vsub.f32 %v148, %v667
    %669 = vmatpush.msra.mxu0 %v668
    %v670 = vand.u32 %v146, 4294901760
    %v671 = vsub.f32 %v146, %v670
    %672 = vmatpush.msra.mxu0 %v671
    %v673 = vand.u32 %v144, 4294901760
    %v674 = vsub.f32 %v144, %v673
    %675 = vmatpush.msra.mxu0 %v674
    %v676 = vand.u32 %v142, 4294901760
    %v677 = vsub.f32 %v142, %v676
    %678 = vmatpush.msra.mxu0 %v677
    %v679 = vand.u32 %v140, 4294901760
    %v680 = vsub.f32 %v140, %v679
    %681 = vmatpush.msra.mxu0 %v680
    %v682 = vand.u32 %v138, 4294901760
    %v683 = vsub.f32 %v138, %v682
    %684 = vmatpush.msra.mxu0 %v683
    %v685 = vand.u32 %v136, 4294901760
    %v686 = vsub.f32 %v136, %v685
    %687 = vmatpush.msra.mxu0 %v686
    %v688 = vand.u32 %v134, 4294901760
    %v689 = vsub.f32 %v134, %v688
    %690 = vmatpush.msra.mxu0 %v689
    %v691 = vand.u32 %v132, 4294901760
    %v692 = vsub.f32 %v132, %v691
    %693 = vmatpush.msra.mxu0 %v692
    %v694 = vand.u32 %v130, 4294901760
    %v695 = vsub.f32 %v130, %v694
    %696 = vmatmul.f32.gmra.mxu0 %v695
    %v697 = vpop.f32.mrf.mxu0
    %v698 = vadd.f32 %v644, %v697
    %699 = vdwg.mxu0
    %v700 = vand.u32 %v162, 4294901760
    %701 = vmatpush.msra.mxu0 %v700
    %v702 = vand.u32 %v160, 4294901760
    %703 = vmatpush.msra.mxu0 %v702
    %v704 = vand.u32 %v158, 4294901760
    %705 = vmatpush.msra.mxu0 %v704
    %v706 = vand.u32 %v156, 4294901760
    %707 = vmatpush.msra.mxu0 %v706
    %v708 = vand.u32 %v154, 4294901760
    %709 = vmatpush.msra.mxu0 %v708
    %v710 = vand.u32 %v152, 4294901760
    %711 = vmatpush.msra.mxu0 %v710
    %v712 = vand.u32 %v150, 4294901760
    %713 = vmatpush.msra.mxu0 %v712
    %v714 = vand.u32 %v148, 4294901760
    %715 = vmatpush.msra.mxu0 %v714
    %v716 = vand.u32 %v146, 4294901760
    %717 = vmatpush.msra.mxu0 %v716
    %v718 = vand.u32 %v144, 4294901760
    %719 = vmatpush.msra.mxu0 %v718
    %v720 = vand.u32 %v142, 4294901760
    %721 = vmatpush.msra.mxu0 %v720
    %v722 = vand.u32 %v140, 4294901760
    %723 = vmatpush.msra.mxu0 %v722
    %v724 = vand.u32 %v138, 4294901760
    %725 = vmatpush.msra.mxu0 %v724
    %v726 = vand.u32 %v136, 4294901760
    %727 = vmatpush.msra.mxu0 %v726
    %v728 = vand.u32 %v134, 4294901760
    %729 = vmatpush.msra.mxu0 %v728
    %v730 = vand.u32 %v132, 4294901760
    %731 = vmatpush.msra.mxu0 %v730
    %v732 = vand.u32 %v130, 4294901760
    %v733 = vsub.f32 %v130, %v732
    %v734 = vand.u32 %v733, 4294901760
    %735 = vmatmul.f32.gmra.mxu0 %v734
    %v736 = vpop.f32.mrf.mxu0
    %v737 = vadd.f32 %v698, %v736
    %738 = vdwg.mxu0
    %v739 = vand.u32 %v162, 4294901760
    %v740 = vsub.f32 %v162, %v739
    %v741 = vand.u32 %v740, 4294901760
    %742 = vmatpush.msra.mxu0 %v741
    %v743 = vand.u32 %v160, 4294901760
    %v744 = vsub.f32 %v160, %v743
    %v745 = vand.u32 %v744, 4294901760
    %746 = vmatpush.msra.mxu0 %v745
    %v747 = vand.u32 %v158, 4294901760
    %v748 = vsub.f32 %v158, %v747
    %v749 = vand.u32 %v748, 4294901760
    %750 = vmatpush.msra.mxu0 %v749
    %v751 = vand.u32 %v156, 4294901760
    %v752 = vsub.f32 %v156, %v751
    %v753 = vand.u32 %v752, 4294901760
    %754 = vmatpush.msra.mxu0 %v753
    %v755 = vand.u32 %v154, 4294901760
    %v756 = vsub.f32 %v154, %v755
    %v757 = vand.u32 %v756, 4294901760
    %758 = vmatpush.msra.mxu0 %v757
    %v759 = vand.u32 %v152, 4294901760
    %v760 = vsub.f32 %v152, %v759
    %v761 = vand.u32 %v760, 4294901760
    %762 = vmatpush.msra.mxu0 %v761
    %v763 = vand.u32 %v150, 4294901760
    %v764 = vsub.f32 %v150, %v763
    %v765 = vand.u32 %v764, 4294901760
    %766 = vmatpush.msra.mxu0 %v765
    %v767 = vand.u32 %v148, 4294901760
    %v768 = vsub.f32 %v148, %v767
    %v769 = vand.u32 %v768, 4294901760
    %770 = vmatpush.msra.mxu0 %v769
    %v771 = vand.u32 %v146, 4294901760
    %v772 = vsub.f32 %v146, %v771
    %v773 = vand.u32 %v772, 4294901760
    %774 = vmatpush.msra.mxu0 %v773
    %v775 = vand.u32 %v144, 4294901760
    %v776 = vsub.f32 %v144, %v775
    %v777 = vand.u32 %v776, 4294901760
    %778 = vmatpush.msra.mxu0 %v777
    %v779 = vand.u32 %v142, 4294901760
    %v780 = vsub.f32 %v142, %v779
    %v781 = vand.u32 %v780, 4294901760
    %782 = vmatpush.msra.mxu0 %v781
    %v783 = vand.u32 %v140, 4294901760
    %v784 = vsub.f32 %v140, %v783
    %v785 = vand.u32 %v784, 4294901760
    %786 = vmatpush.msra.mxu0 %v785
    %v787 = vand.u32 %v138, 4294901760
    %v788 = vsub.f32 %v138, %v787
    %v789 = vand.u32 %v788, 4294901760
    %790 = vmatpush.msra.mxu0 %v789
    %v791 = vand.u32 %v136, 4294901760
    %v792 = vsub.f32 %v136, %v791
    %v793 = vand.u32 %v792, 4294901760
    %794 = vmatpush.msra.mxu0 %v793
    %v795 = vand.u32 %v134, 4294901760
    %v796 = vsub.f32 %v134, %v795
    %v797 = vand.u32 %v796, 4294901760
    %798 = vmatpush.msra.mxu0 %v797
    %v799 = vand.u32 %v132, 4294901760
    %v800 = vsub.f32 %v132, %v799
    %v801 = vand.u32 %v800, 4294901760
    %802 = vmatpush.msra.mxu0 %v801
    %v803 = vand.u32 %v130, 4294901760
    %804 = vmatmul.f32.gmra.mxu0 %v803
    %v805 = vpop.f32.mrf.mxu0
    %v806 = vadd.f32 %v737, %v805
    %807 = vdwg.mxu0
    %v808 = vand.u32 %v162, 4294901760
    %809 = vmatpush.msra.mxu0 %v808
    %v810 = vand.u32 %v160, 4294901760
    %811 = vmatpush.msra.mxu0 %v810
    %v812 = vand.u32 %v158, 4294901760
    %813 = vmatpush.msra.mxu0 %v812
    %v814 = vand.u32 %v156, 4294901760
    %815 = vmatpush.msra.mxu0 %v814
    %v816 = vand.u32 %v154, 4294901760
    %817 = vmatpush.msra.mxu0 %v816
    %v818 = vand.u32 %v152, 4294901760
    %819 = vmatpush.msra.mxu0 %v818
    %v820 = vand.u32 %v150, 4294901760
    %821 = vmatpush.msra.mxu0 %v820
    %v822 = vand.u32 %v148, 4294901760
    %823 = vmatpush.msra.mxu0 %v822
    %v824 = vand.u32 %v146, 4294901760
    %825 = vmatpush.msra.mxu0 %v824
    %v826 = vand.u32 %v144, 4294901760
    %827 = vmatpush.msra.mxu0 %v826
    %v828 = vand.u32 %v142, 4294901760
    %829 = vmatpush.msra.mxu0 %v828
    %v830 = vand.u32 %v140, 4294901760
    %831 = vmatpush.msra.mxu0 %v830
    %v832 = vand.u32 %v138, 4294901760
    %833 = vmatpush.msra.mxu0 %v832
    %v834 = vand.u32 %v136, 4294901760
    %835 = vmatpush.msra.mxu0 %v834
    %v836 = vand.u32 %v134, 4294901760
    %837 = vmatpush.msra.mxu0 %v836
    %v838 = vand.u32 %v132, 4294901760
    %839 = vmatpush.msra.mxu0 %v838
    %v840 = vand.u32 %v130, 4294901760
    %841 = vmatmul.f32.gmra.mxu0 %v840
    %v842 = vpop.f32.mrf.mxu0
    %v843 = vadd.f32 %v806, %v842
    %844 = vdwg.mxu0
    %v845 = vand.u32 %v96, 4294901760
    %846 = vmatpush.msra.mxu0 %v845
    %v847 = vand.u32 %v94, 4294901760
    %848 = vmatpush.msra.mxu0 %v847
    %v849 = vand.u32 %v92, 4294901760
    %850 = vmatpush.msra.mxu0 %v849
    %v851 = vand.u32 %v90, 4294901760
    %852 = vmatpush.msra.mxu0 %v851
    %v853 = vand.u32 %v88, 4294901760
    %854 = vmatpush.msra.mxu0 %v853
    %v855 = vand.u32 %v86, 4294901760
    %856 = vmatpush.msra.mxu0 %v855
    %v857 = vand.u32 %v84, 4294901760
    %858 = vmatpush.msra.mxu0 %v857
    %v859 = vand.u32 %v82, 4294901760
    %860 = vmatpush.msra.mxu0 %v859
    %v861 = vand.u32 %v80, 4294901760
    %862 = vmatpush.msra.mxu0 %v861
    %v863 = vand.u32 %v78, 4294901760
    %864 = vmatpush.msra.mxu0 %v863
    %v865 = vand.u32 %v76, 4294901760
    %866 = vmatpush.msra.mxu0 %v865
    %v867 = vand.u32 %v74, 4294901760
    %868 = vmatpush.msra.mxu0 %v867
    %v869 = vand.u32 %v72, 4294901760
    %870 = vmatpush.msra.mxu0 %v869
    %v871 = vand.u32 %v70, 4294901760
    %872 = vmatpush.msra.mxu0 %v871
    %v873 = vand.u32 %v68, 4294901760
    %874 = vmatpush.msra.mxu0 %v873
    %v875 = vand.u32 %v66, 4294901760
    %876 = vmatpush.msra.mxu0 %v875
    %v877 = vand.u32 %v64, 4294901760
    %v878 = vsub.f32 %v64, %v877
    %v879 = vand.u32 %v878, 4294901760
    %v880 = vsub.f32 %v878, %v879
    %v881 = vand.u32 %v880, 4294901760
    %882 = vmatmul.f32.gmra.mxu0 %v881
    %v883 = vpop.f32.mrf.mxu0
    %v884 = vadd.f32 %v502, %v883
    %885 = vdwg.mxu0
    %v886 = vand.u32 %v96, 4294901760
    %v887 = vsub.f32 %v96, %v886
    %v888 = vand.u32 %v887, 4294901760
    %v889 = vsub.f32 %v887, %v888
    %v890 = vand.u32 %v889, 4294901760
    %891 = vmatpush.msra.mxu0 %v890
    %v892 = vand.u32 %v94, 4294901760
    %v893 = vsub.f32 %v94, %v892
    %v894 = vand.u32 %v893, 4294901760
    %v895 = vsub.f32 %v893, %v894
    %v896 = vand.u32 %v895, 4294901760
    %897 = vmatpush.msra.mxu0 %v896
    %v898 = vand.u32 %v92, 4294901760
    %v899 = vsub.f32 %v92, %v898
    %v900 = vand.u32 %v899, 4294901760
    %v901 = vsub.f32 %v899, %v900
    %v902 = vand.u32 %v901, 4294901760
    %903 = vmatpush.msra.mxu0 %v902
    %v904 = vand.u32 %v90, 4294901760
    %v905 = vsub.f32 %v90, %v904
    %v906 = vand.u32 %v905, 4294901760
    %v907 = vsub.f32 %v905, %v906
    %v908 = vand.u32 %v907, 4294901760
    %909 = vmatpush.msra.mxu0 %v908
    %v910 = vand.u32 %v88, 4294901760
    %v911 = vsub.f32 %v88, %v910
    %v912 = vand.u32 %v911, 4294901760
    %v913 = vsub.f32 %v911, %v912
    %v914 = vand.u32 %v913, 4294901760
    %915 = vmatpush.msra.mxu0 %v914
    %v916 = vand.u32 %v86, 4294901760
    %v917 = vsub.f32 %v86, %v916
    %v918 = vand.u32 %v917, 4294901760
    %v919 = vsub.f32 %v917, %v918
    %v920 = vand.u32 %v919, 4294901760
    %921 = vmatpush.msra.mxu0 %v920
    %v922 = vand.u32 %v84, 4294901760
    %v923 = vsub.f32 %v84, %v922
    %v924 = vand.u32 %v923, 4294901760
    %v925 = vsub.f32 %v923, %v924
    %v926 = vand.u32 %v925, 4294901760
    %927 = vmatpush.msra.mxu0 %v926
    %v928 = vand.u32 %v82, 4294901760
    %v929 = vsub.f32 %v82, %v928
    %v930 = vand.u32 %v929, 4294901760
    %v931 = vsub.f32 %v929, %v930
    %v932 = vand.u32 %v931, 4294901760
    %933 = vmatpush.msra.mxu0 %v932
    %v934 = vand.u32 %v80, 4294901760
    %v935 = vsub.f32 %v80, %v934
    %v936 = vand.u32 %v935, 4294901760
    %v937 = vsub.f32 %v935, %v936
    %v938 = vand.u32 %v937, 4294901760
    %939 = vmatpush.msra.mxu0 %v938
    %v940 = vand.u32 %v78, 4294901760
    %v941 = vsub.f32 %v78, %v940
    %v942 = vand.u32 %v941, 4294901760
    %v943 = vsub.f32 %v941, %v942
    %v944 = vand.u32 %v943, 4294901760
    %945 = vmatpush.msra.mxu0 %v944
    %v946 = vand.u32 %v76, 4294901760
    %v947 = vsub.f32 %v76, %v946
    %v948 = vand.u32 %v947, 4294901760
    %v949 = vsub.f32 %v947, %v948
    %v950 = vand.u32 %v949, 4294901760
    %951 = vmatpush.msra.mxu0 %v950
    %v952 = vand.u32 %v74, 4294901760
    %v953 = vsub.f32 %v74, %v952
    %v954 = vand.u32 %v953, 4294901760
    %v955 = vsub.f32 %v953, %v954
    %v956 = vand.u32 %v955, 4294901760
    %957 = vmatpush.msra.mxu0 %v956
    %v958 = vand.u32 %v72, 4294901760
    %v959 = vsub.f32 %v72, %v958
    %v960 = vand.u32 %v959, 4294901760
    %v961 = vsub.f32 %v959, %v960
    %v962 = vand.u32 %v961, 4294901760
    %963 = vmatpush.msra.mxu0 %v962
    %v964 = vand.u32 %v70, 4294901760
    %v965 = vsub.f32 %v70, %v964
    %v966 = vand.u32 %v965, 4294901760
    %v967 = vsub.f32 %v965, %v966
    %v968 = vand.u32 %v967, 4294901760
    %969 = vmatpush.msra.mxu0 %v968
    %v970 = vand.u32 %v68, 4294901760
    %v971 = vsub.f32 %v68, %v970
    %v972 = vand.u32 %v971, 4294901760
    %v973 = vsub.f32 %v971, %v972
    %v974 = vand.u32 %v973, 4294901760
    %975 = vmatpush.msra.mxu0 %v974
    %v976 = vand.u32 %v66, 4294901760
    %v977 = vsub.f32 %v66, %v976
    %v978 = vand.u32 %v977, 4294901760
    %v979 = vsub.f32 %v977, %v978
    %v980 = vand.u32 %v979, 4294901760
    %981 = vmatpush.msra.mxu0 %v980
    %v982 = vand.u32 %v64, 4294901760
    %983 = vmatmul.f32.gmra.mxu0 %v982
    %v984 = vpop.f32.mrf.mxu0
    %v985 = vadd.f32 %v884, %v984
    %986 = vdwg.mxu0
    %v987 = vand.u32 %v96, 4294901760
    %v988 = vsub.f32 %v96, %v987
    %989 = vmatpush.msra.mxu0 %v988
    %v990 = vand.u32 %v94, 4294901760
    %v991 = vsub.f32 %v94, %v990
    %992 = vmatpush.msra.mxu0 %v991
    %v993 = vand.u32 %v92, 4294901760
    %v994 = vsub.f32 %v92, %v993
    %995 = vmatpush.msra.mxu0 %v994
    %v996 = vand.u32 %v90, 4294901760
    %v997 = vsub.f32 %v90, %v996
    %998 = vmatpush.msra.mxu0 %v997
    %v999 = vand.u32 %v88, 4294901760
    %v1000 = vsub.f32 %v88, %v999
    %1001 = vmatpush.msra.mxu0 %v1000
    %v1002 = vand.u32 %v86, 4294901760
    %v1003 = vsub.f32 %v86, %v1002
    %1004 = vmatpush.msra.mxu0 %v1003
    %v1005 = vand.u32 %v84, 4294901760
    %v1006 = vsub.f32 %v84, %v1005
    %1007 = vmatpush.msra.mxu0 %v1006
    %v1008 = vand.u32 %v82, 4294901760
    %v1009 = vsub.f32 %v82, %v1008
    %1010 = vmatpush.msra.mxu0 %v1009
    %v1011 = vand.u32 %v80, 4294901760
    %v1012 = vsub.f32 %v80, %v1011
    %1013 = vmatpush.msra.mxu0 %v1012
    %v1014 = vand.u32 %v78, 4294901760
    %v1015 = vsub.f32 %v78, %v1014
    %1016 = vmatpush.msra.mxu0 %v1015
    %v1017 = vand.u32 %v76, 4294901760
    %v1018 = vsub.f32 %v76, %v1017
    %1019 = vmatpush.msra.mxu0 %v1018
    %v1020 = vand.u32 %v74, 4294901760
    %v1021 = vsub.f32 %v74, %v1020
    %1022 = vmatpush.msra.mxu0 %v1021
    %v1023 = vand.u32 %v72, 4294901760
    %v1024 = vsub.f32 %v72, %v1023
    %1025 = vmatpush.msra.mxu0 %v1024
    %v1026 = vand.u32 %v70, 4294901760
    %v1027 = vsub.f32 %v70, %v1026
    %1028 = vmatpush.msra.mxu0 %v1027
    %v1029 = vand.u32 %v68, 4294901760
    %v1030 = vsub.f32 %v68, %v1029
    %1031 = vmatpush.msra.mxu0 %v1030
    %v1032 = vand.u32 %v66, 4294901760
    %v1033 = vsub.f32 %v66, %v1032
    %1034 = vmatpush.msra.mxu0 %v1033
    %v1035 = vand.u32 %v64, 4294901760
    %v1036 = vsub.f32 %v64, %v1035
    %1037 = vmatmul.f32.gmra.mxu0 %v1036
    %v1038 = vpop.f32.mrf.mxu0
    %v1039 = vadd.f32 %v985, %v1038
    %1040 = vdwg.mxu0
    %v1041 = vand.u32 %v96, 4294901760
    %1042 = vmatpush.msra.mxu0 %v1041
    %v1043 = vand.u32 %v94, 4294901760
    %1044 = vmatpush.msra.mxu0 %v1043
    %v1045 = vand.u32 %v92, 4294901760
    %1046 = vmatpush.msra.mxu0 %v1045
    %v1047 = vand.u32 %v90, 4294901760
    %1048 = vmatpush.msra.mxu0 %v1047
    %v1049 = vand.u32 %v88, 4294901760
    %1050 = vmatpush.msra.mxu0 %v1049
    %v1051 = vand.u32 %v86, 4294901760
    %1052 = vmatpush.msra.mxu0 %v1051
    %v1053 = vand.u32 %v84, 4294901760
    %1054 = vmatpush.msra.mxu0 %v1053
    %v1055 = vand.u32 %v82, 4294901760
    %1056 = vmatpush.msra.mxu0 %v1055
    %v1057 = vand.u32 %v80, 4294901760
    %1058 = vmatpush.msra.mxu0 %v1057
    %v1059 = vand.u32 %v78, 4294901760
    %1060 = vmatpush.msra.mxu0 %v1059
    %v1061 = vand.u32 %v76, 4294901760
    %1062 = vmatpush.msra.mxu0 %v1061
    %v1063 = vand.u32 %v74, 4294901760
    %1064 = vmatpush.msra.mxu0 %v1063
    %v1065 = vand.u32 %v72, 4294901760
    %1066 = vmatpush.msra.mxu0 %v1065
    %v1067 = vand.u32 %v70, 4294901760
    %1068 = vmatpush.msra.mxu0 %v1067
    %v1069 = vand.u32 %v68, 4294901760
    %1070 = vmatpush.msra.mxu0 %v1069
    %v1071 = vand.u32 %v66, 4294901760
    %1072 = vmatpush.msra.mxu0 %v1071
    %v1073 = vand.u32 %v64, 4294901760
    %v1074 = vsub.f32 %v64, %v1073
    %v1075 = vand.u32 %v1074, 4294901760
    %1076 = vmatmul.f32.gmra.mxu0 %v1075
    %v1077 = vpop.f32.mrf.mxu0
    %v1078 = vadd.f32 %v1039, %v1077
    %1079 = vdwg.mxu0
    %v1080 = vand.u32 %v96, 4294901760
    %v1081 = vsub.f32 %v96, %v1080
    %v1082 = vand.u32 %v1081, 4294901760
    %1083 = vmatpush.msra.mxu0 %v1082
    %v1084 = vand.u32 %v94, 4294901760
    %v1085 = vsub.f32 %v94, %v1084
    %v1086 = vand.u32 %v1085, 4294901760
    %1087 = vmatpush.msra.mxu0 %v1086
    %v1088 = vand.u32 %v92, 4294901760
    %v1089 = vsub.f32 %v92, %v1088
    %v1090 = vand.u32 %v1089, 4294901760
    %1091 = vmatpush.msra.mxu0 %v1090
    %v1092 = vand.u32 %v90, 4294901760
    %v1093 = vsub.f32 %v90, %v1092
    %v1094 = vand.u32 %v1093, 4294901760
    %1095 = vmatpush.msra.mxu0 %v1094
    %v1096 = vand.u32 %v88, 4294901760
    %v1097 = vsub.f32 %v88, %v1096
    %v1098 = vand.u32 %v1097, 4294901760
    %1099 = vmatpush.msra.mxu0 %v1098
    %v1100 = vand.u32 %v86, 4294901760
    %v1101 = vsub.f32 %v86, %v1100
    %v1102 = vand.u32 %v1101, 4294901760
    %1103 = vmatpush.msra.mxu0 %v1102
    %v1104 = vand.u32 %v84, 4294901760
    %v1105 = vsub.f32 %v84, %v1104
    %v1106 = vand.u32 %v1105, 4294901760
    %1107 = vmatpush.msra.mxu0 %v1106
    %v1108 = vand.u32 %v82, 4294901760
    %v1109 = vsub.f32 %v82, %v1108
    %v1110 = vand.u32 %v1109, 4294901760
    %1111 = vmatpush.msra.mxu0 %v1110
    %v1112 = vand.u32 %v80, 4294901760
    %v1113 = vsub.f32 %v80, %v1112
    %v1114 = vand.u32 %v1113, 4294901760
    %1115 = vmatpush.msra.mxu0 %v1114
    %v1116 = vand.u32 %v78, 4294901760
    %v1117 = vsub.f32 %v78, %v1116
    %v1118 = vand.u32 %v1117, 4294901760
    %1119 = vmatpush.msra.mxu0 %v1118
    %v1120 = vand.u32 %v76, 4294901760
    %v1121 = vsub.f32 %v76, %v1120
    %v1122 = vand.u32 %v1121, 4294901760
    %1123 = vmatpush.msra.mxu0 %v1122
    %v1124 = vand.u32 %v74, 4294901760
    %v1125 = vsub.f32 %v74, %v1124
    %v1126 = vand.u32 %v1125, 4294901760
    %1127 = vmatpush.msra.mxu0 %v1126
    %v1128 = vand.u32 %v72, 4294901760
    %v1129 = vsub.f32 %v72, %v1128
    %v1130 = vand.u32 %v1129, 4294901760
    %1131 = vmatpush.msra.mxu0 %v1130
    %v1132 = vand.u32 %v70, 4294901760
    %v1133 = vsub.f32 %v70, %v1132
    %v1134 = vand.u32 %v1133, 4294901760
    %1135 = vmatpush.msra.mxu0 %v1134
    %v1136 = vand.u32 %v68, 4294901760
    %v1137 = vsub.f32 %v68, %v1136
    %v1138 = vand.u32 %v1137, 4294901760
    %1139 = vmatpush.msra.mxu0 %v1138
    %v1140 = vand.u32 %v66, 4294901760
    %v1141 = vsub.f32 %v66, %v1140
    %v1142 = vand.u32 %v1141, 4294901760
    %1143 = vmatpush.msra.mxu0 %v1142
    %v1144 = vand.u32 %v64, 4294901760
    %1145 = vmatmul.f32.gmra.mxu0 %v1144
    %v1146 = vpop.f32.mrf.mxu0
    %v1147 = vadd.f32 %v1078, %v1146
    %1148 = vdwg.mxu0
    %v1149 = vand.u32 %v96, 4294901760
    %1150 = vmatpush.msra.mxu0 %v1149
    %v1151 = vand.u32 %v94, 4294901760
    %1152 = vmatpush.msra.mxu0 %v1151
    %v1153 = vand.u32 %v92, 4294901760
    %1154 = vmatpush.msra.mxu0 %v1153
    %v1155 = vand.u32 %v90, 4294901760
    %1156 = vmatpush.msra.mxu0 %v1155
    %v1157 = vand.u32 %v88, 4294901760
    %1158 = vmatpush.msra.mxu0 %v1157
    %v1159 = vand.u32 %v86, 4294901760
    %1160 = vmatpush.msra.mxu0 %v1159
    %v1161 = vand.u32 %v84, 4294901760
    %1162 = vmatpush.msra.mxu0 %v1161
    %v1163 = vand.u32 %v82, 4294901760
    %1164 = vmatpush.msra.mxu0 %v1163
    %v1165 = vand.u32 %v80, 4294901760
    %1166 = vmatpush.msra.mxu0 %v1165
    %v1167 = vand.u32 %v78, 4294901760
    %1168 = vmatpush.msra.mxu0 %v1167
    %v1169 = vand.u32 %v76, 4294901760
    %1170 = vmatpush.msra.mxu0 %v1169
    %v1171 = vand.u32 %v74, 4294901760
    %1172 = vmatpush.msra.mxu0 %v1171
    %v1173 = vand.u32 %v72, 4294901760
    %1174 = vmatpush.msra.mxu0 %v1173
    %v1175 = vand.u32 %v70, 4294901760
    %1176 = vmatpush.msra.mxu0 %v1175
    %v1177 = vand.u32 %v68, 4294901760
    %1178 = vmatpush.msra.mxu0 %v1177
    %v1179 = vand.u32 %v66, 4294901760
    %1180 = vmatpush.msra.mxu0 %v1179
    %v1181 = vand.u32 %v64, 4294901760
    %1182 = vmatmul.f32.gmra.mxu0 %v1181
    %v1183 = vpop.f32.mrf.mxu0
    %v1184 = vadd.f32 %v1147, %v1183
    %1185 = vdwg.mxu0
    %v1186 = vand.u32 %v128, 4294901760
    %1187 = vmatpush.msra.mxu0 %v1186
    %v1188 = vand.u32 %v126, 4294901760
    %1189 = vmatpush.msra.mxu0 %v1188
    %v1190 = vand.u32 %v124, 4294901760
    %1191 = vmatpush.msra.mxu0 %v1190
    %v1192 = vand.u32 %v122, 4294901760
    %1193 = vmatpush.msra.mxu0 %v1192
    %v1194 = vand.u32 %v120, 4294901760
    %1195 = vmatpush.msra.mxu0 %v1194
    %v1196 = vand.u32 %v118, 4294901760
    %1197 = vmatpush.msra.mxu0 %v1196
    %v1198 = vand.u32 %v116, 4294901760
    %1199 = vmatpush.msra.mxu0 %v1198
    %v1200 = vand.u32 %v114, 4294901760
    %1201 = vmatpush.msra.mxu0 %v1200
    %v1202 = vand.u32 %v112, 4294901760
    %1203 = vmatpush.msra.mxu0 %v1202
    %v1204 = vand.u32 %v110, 4294901760
    %1205 = vmatpush.msra.mxu0 %v1204
    %v1206 = vand.u32 %v108, 4294901760
    %1207 = vmatpush.msra.mxu0 %v1206
    %v1208 = vand.u32 %v106, 4294901760
    %1209 = vmatpush.msra.mxu0 %v1208
    %v1210 = vand.u32 %v104, 4294901760
    %1211 = vmatpush.msra.mxu0 %v1210
    %v1212 = vand.u32 %v102, 4294901760
    %1213 = vmatpush.msra.mxu0 %v1212
    %v1214 = vand.u32 %v100, 4294901760
    %1215 = vmatpush.msra.mxu0 %v1214
    %v1216 = vand.u32 %v98, 4294901760
    %1217 = vmatpush.msra.mxu0 %v1216
    %v1218 = vand.u32 %v65, 4294901760
    %v1219 = vsub.f32 %v65, %v1218
    %v1220 = vand.u32 %v1219, 4294901760
    %v1221 = vsub.f32 %v1219, %v1220
    %v1222 = vand.u32 %v1221, 4294901760
    %1223 = vmatmul.f32.gmra.mxu0 %v1222
    %v1224 = vpop.f32.mrf.mxu0
    %v1225 = vadd.f32 %v1184, %v1224
    %1226 = vdwg.mxu0
    %v1227 = vand.u32 %v128, 4294901760
    %v1228 = vsub.f32 %v128, %v1227
    %v1229 = vand.u32 %v1228, 4294901760
    %v1230 = vsub.f32 %v1228, %v1229
    %v1231 = vand.u32 %v1230, 4294901760
    %1232 = vmatpush.msra.mxu0 %v1231
    %v1233 = vand.u32 %v126, 4294901760
    %v1234 = vsub.f32 %v126, %v1233
    %v1235 = vand.u32 %v1234, 4294901760
    %v1236 = vsub.f32 %v1234, %v1235
    %v1237 = vand.u32 %v1236, 4294901760
    %1238 = vmatpush.msra.mxu0 %v1237
    %v1239 = vand.u32 %v124, 4294901760
    %v1240 = vsub.f32 %v124, %v1239
    %v1241 = vand.u32 %v1240, 4294901760
    %v1242 = vsub.f32 %v1240, %v1241
    %v1243 = vand.u32 %v1242, 4294901760
    %1244 = vmatpush.msra.mxu0 %v1243
    %v1245 = vand.u32 %v122, 4294901760
    %v1246 = vsub.f32 %v122, %v1245
    %v1247 = vand.u32 %v1246, 4294901760
    %v1248 = vsub.f32 %v1246, %v1247
    %v1249 = vand.u32 %v1248, 4294901760
    %1250 = vmatpush.msra.mxu0 %v1249
    %v1251 = vand.u32 %v120, 4294901760
    %v1252 = vsub.f32 %v120, %v1251
    %v1253 = vand.u32 %v1252, 4294901760
    %v1254 = vsub.f32 %v1252, %v1253
    %v1255 = vand.u32 %v1254, 4294901760
    %1256 = vmatpush.msra.mxu0 %v1255
    %v1257 = vand.u32 %v118, 4294901760
    %v1258 = vsub.f32 %v118, %v1257
    %v1259 = vand.u32 %v1258, 4294901760
    %v1260 = vsub.f32 %v1258, %v1259
    %v1261 = vand.u32 %v1260, 4294901760
    %1262 = vmatpush.msra.mxu0 %v1261
    %v1263 = vand.u32 %v116, 4294901760
    %v1264 = vsub.f32 %v116, %v1263
    %v1265 = vand.u32 %v1264, 4294901760
    %v1266 = vsub.f32 %v1264, %v1265
    %v1267 = vand.u32 %v1266, 4294901760
    %1268 = vmatpush.msra.mxu0 %v1267
    %v1269 = vand.u32 %v114, 4294901760
    %v1270 = vsub.f32 %v114, %v1269
    %v1271 = vand.u32 %v1270, 4294901760
    %v1272 = vsub.f32 %v1270, %v1271
    %v1273 = vand.u32 %v1272, 4294901760
    %1274 = vmatpush.msra.mxu0 %v1273
    %v1275 = vand.u32 %v112, 4294901760
    %v1276 = vsub.f32 %v112, %v1275
    %v1277 = vand.u32 %v1276, 4294901760
    %v1278 = vsub.f32 %v1276, %v1277
    %v1279 = vand.u32 %v1278, 4294901760
    %1280 = vmatpush.msra.mxu0 %v1279
    %v1281 = vand.u32 %v110, 4294901760
    %v1282 = vsub.f32 %v110, %v1281
    %v1283 = vand.u32 %v1282, 4294901760
    %v1284 = vsub.f32 %v1282, %v1283
    %v1285 = vand.u32 %v1284, 4294901760
    %1286 = vmatpush.msra.mxu0 %v1285
    %v1287 = vand.u32 %v108, 4294901760
    %v1288 = vsub.f32 %v108, %v1287
    %v1289 = vand.u32 %v1288, 4294901760
    %v1290 = vsub.f32 %v1288, %v1289
    %v1291 = vand.u32 %v1290, 4294901760
    %1292 = vmatpush.msra.mxu0 %v1291
    %v1293 = vand.u32 %v106, 4294901760
    %v1294 = vsub.f32 %v106, %v1293
    %v1295 = vand.u32 %v1294, 4294901760
    %v1296 = vsub.f32 %v1294, %v1295
    %v1297 = vand.u32 %v1296, 4294901760
    %1298 = vmatpush.msra.mxu0 %v1297
    %v1299 = vand.u32 %v104, 4294901760
    %v1300 = vsub.f32 %v104, %v1299
    %v1301 = vand.u32 %v1300, 4294901760
    %v1302 = vsub.f32 %v1300, %v1301
    %v1303 = vand.u32 %v1302, 4294901760
    %1304 = vmatpush.msra.mxu0 %v1303
    %v1305 = vand.u32 %v102, 4294901760
    %v1306 = vsub.f32 %v102, %v1305
    %v1307 = vand.u32 %v1306, 4294901760
    %v1308 = vsub.f32 %v1306, %v1307
    %v1309 = vand.u32 %v1308, 4294901760
    %1310 = vmatpush.msra.mxu0 %v1309
    %v1311 = vand.u32 %v100, 4294901760
    %v1312 = vsub.f32 %v100, %v1311
    %v1313 = vand.u32 %v1312, 4294901760
    %v1314 = vsub.f32 %v1312, %v1313
    %v1315 = vand.u32 %v1314, 4294901760
    %1316 = vmatpush.msra.mxu0 %v1315
    %v1317 = vand.u32 %v98, 4294901760
    %v1318 = vsub.f32 %v98, %v1317
    %v1319 = vand.u32 %v1318, 4294901760
    %v1320 = vsub.f32 %v1318, %v1319
    %v1321 = vand.u32 %v1320, 4294901760
    %1322 = vmatpush.msra.mxu0 %v1321
    %v1323 = vand.u32 %v65, 4294901760
    %1324 = vmatmul.f32.gmra.mxu0 %v1323
    %v1325 = vpop.f32.mrf.mxu0
    %v1326 = vadd.f32 %v1225, %v1325
    %1327 = vdwg.mxu0
    %v1328 = vand.u32 %v128, 4294901760
    %v1329 = vsub.f32 %v128, %v1328
    %1330 = vmatpush.msra.mxu0 %v1329
    %v1331 = vand.u32 %v126, 4294901760
    %v1332 = vsub.f32 %v126, %v1331
    %1333 = vmatpush.msra.mxu0 %v1332
    %v1334 = vand.u32 %v124, 4294901760
    %v1335 = vsub.f32 %v124, %v1334
    %1336 = vmatpush.msra.mxu0 %v1335
    %v1337 = vand.u32 %v122, 4294901760
    %v1338 = vsub.f32 %v122, %v1337
    %1339 = vmatpush.msra.mxu0 %v1338
    %v1340 = vand.u32 %v120, 4294901760
    %v1341 = vsub.f32 %v120, %v1340
    %1342 = vmatpush.msra.mxu0 %v1341
    %v1343 = vand.u32 %v118, 4294901760
    %v1344 = vsub.f32 %v118, %v1343
    %1345 = vmatpush.msra.mxu0 %v1344
    %v1346 = vand.u32 %v116, 4294901760
    %v1347 = vsub.f32 %v116, %v1346
    %1348 = vmatpush.msra.mxu0 %v1347
    %v1349 = vand.u32 %v114, 4294901760
    %v1350 = vsub.f32 %v114, %v1349
    %1351 = vmatpush.msra.mxu0 %v1350
    %v1352 = vand.u32 %v112, 4294901760
    %v1353 = vsub.f32 %v112, %v1352
    %1354 = vmatpush.msra.mxu0 %v1353
    %v1355 = vand.u32 %v110, 4294901760
    %v1356 = vsub.f32 %v110, %v1355
    %1357 = vmatpush.msra.mxu0 %v1356
    %v1358 = vand.u32 %v108, 4294901760
    %v1359 = vsub.f32 %v108, %v1358
    %1360 = vmatpush.msra.mxu0 %v1359
    %v1361 = vand.u32 %v106, 4294901760
    %v1362 = vsub.f32 %v106, %v1361
    %1363 = vmatpush.msra.mxu0 %v1362
    %v1364 = vand.u32 %v104, 4294901760
    %v1365 = vsub.f32 %v104, %v1364
    %1366 = vmatpush.msra.mxu0 %v1365
    %v1367 = vand.u32 %v102, 4294901760
    %v1368 = vsub.f32 %v102, %v1367
    %1369 = vmatpush.msra.mxu0 %v1368
    %v1370 = vand.u32 %v100, 4294901760
    %v1371 = vsub.f32 %v100, %v1370
    %1372 = vmatpush.msra.mxu0 %v1371
    %v1373 = vand.u32 %v98, 4294901760
    %v1374 = vsub.f32 %v98, %v1373
    %1375 = vmatpush.msra.mxu0 %v1374
    %v1376 = vand.u32 %v65, 4294901760
    %v1377 = vsub.f32 %v65, %v1376
    %1378 = vmatmul.f32.gmra.mxu0 %v1377
    %v1379 = vpop.f32.mrf.mxu0
    %v1380 = vadd.f32 %v1326, %v1379
    %1381 = vdwg.mxu0
    %v1382 = vand.u32 %v128, 4294901760
    %1383 = vmatpush.msra.mxu0 %v1382
    %v1384 = vand.u32 %v126, 4294901760
    %1385 = vmatpush.msra.mxu0 %v1384
    %v1386 = vand.u32 %v124, 4294901760
    %1387 = vmatpush.msra.mxu0 %v1386
    %v1388 = vand.u32 %v122, 4294901760
    %1389 = vmatpush.msra.mxu0 %v1388
    %v1390 = vand.u32 %v120, 4294901760
    %1391 = vmatpush.msra.mxu0 %v1390
    %v1392 = vand.u32 %v118, 4294901760
    %1393 = vmatpush.msra.mxu0 %v1392
    %v1394 = vand.u32 %v116, 4294901760
    %1395 = vmatpush.msra.mxu0 %v1394
    %v1396 = vand.u32 %v114, 4294901760
    %1397 = vmatpush.msra.mxu0 %v1396
    %v1398 = vand.u32 %v112, 4294901760
    %1399 = vmatpush.msra.mxu0 %v1398
    %v1400 = vand.u32 %v110, 4294901760
    %1401 = vmatpush.msra.mxu0 %v1400
    %v1402 = vand.u32 %v108, 4294901760
    %1403 = vmatpush.msra.mxu0 %v1402
    %v1404 = vand.u32 %v106, 4294901760
    %1405 = vmatpush.msra.mxu0 %v1404
    %v1406 = vand.u32 %v104, 4294901760
    %1407 = vmatpush.msra.mxu0 %v1406
    %v1408 = vand.u32 %v102, 4294901760
    %1409 = vmatpush.msra.mxu0 %v1408
    %v1410 = vand.u32 %v100, 4294901760
    %1411 = vmatpush.msra.mxu0 %v1410
    %v1412 = vand.u32 %v98, 4294901760
    %1413 = vmatpush.msra.mxu0 %v1412
    %v1414 = vand.u32 %v65, 4294901760
    %v1415 = vsub.f32 %v65, %v1414
    %v1416 = vand.u32 %v1415, 4294901760
    %1417 = vmatmul.f32.gmra.mxu0 %v1416
    %v1418 = vpop.f32.mrf.mxu0
    %v1419 = vadd.f32 %v1380, %v1418
    %1420 = vdwg.mxu0
    %v1421 = vand.u32 %v128, 4294901760
    %v1422 = vsub.f32 %v128, %v1421
    %v1423 = vand.u32 %v1422, 4294901760
    %1424 = vmatpush.msra.mxu0 %v1423
    %v1425 = vand.u32 %v126, 4294901760
    %v1426 = vsub.f32 %v126, %v1425
    %v1427 = vand.u32 %v1426, 4294901760
    %1428 = vmatpush.msra.mxu0 %v1427
    %v1429 = vand.u32 %v124, 4294901760
    %v1430 = vsub.f32 %v124, %v1429
    %v1431 = vand.u32 %v1430, 4294901760
    %1432 = vmatpush.msra.mxu0 %v1431
    %v1433 = vand.u32 %v122, 4294901760
    %v1434 = vsub.f32 %v122, %v1433
    %v1435 = vand.u32 %v1434, 4294901760
    %1436 = vmatpush.msra.mxu0 %v1435
    %v1437 = vand.u32 %v120, 4294901760
    %v1438 = vsub.f32 %v120, %v1437
    %v1439 = vand.u32 %v1438, 4294901760
    %1440 = vmatpush.msra.mxu0 %v1439
    %v1441 = vand.u32 %v118, 4294901760
    %v1442 = vsub.f32 %v118, %v1441
    %v1443 = vand.u32 %v1442, 4294901760
    %1444 = vmatpush.msra.mxu0 %v1443
    %v1445 = vand.u32 %v116, 4294901760
    %v1446 = vsub.f32 %v116, %v1445
    %v1447 = vand.u32 %v1446, 4294901760
    %1448 = vmatpush.msra.mxu0 %v1447
    %v1449 = vand.u32 %v114, 4294901760
    %v1450 = vsub.f32 %v114, %v1449
    %v1451 = vand.u32 %v1450, 4294901760
    %1452 = vmatpush.msra.mxu0 %v1451
    %v1453 = vand.u32 %v112, 4294901760
    %v1454 = vsub.f32 %v112, %v1453
    %v1455 = vand.u32 %v1454, 4294901760
    %1456 = vmatpush.msra.mxu0 %v1455
    %v1457 = vand.u32 %v110, 4294901760
    %v1458 = vsub.f32 %v110, %v1457
    %v1459 = vand.u32 %v1458, 4294901760
    %1460 = vmatpush.msra.mxu0 %v1459
    %v1461 = vand.u32 %v108, 4294901760
    %v1462 = vsub.f32 %v108, %v1461
    %v1463 = vand.u32 %v1462, 4294901760
    %1464 = vmatpush.msra.mxu0 %v1463
    %v1465 = vand.u32 %v106, 4294901760
    %v1466 = vsub.f32 %v106, %v1465
    %v1467 = vand.u32 %v1466, 4294901760
    %1468 = vmatpush.msra.mxu0 %v1467
    %v1469 = vand.u32 %v104, 4294901760
    %v1470 = vsub.f32 %v104, %v1469
    %v1471 = vand.u32 %v1470, 4294901760
    %1472 = vmatpush.msra.mxu0 %v1471
    %v1473 = vand.u32 %v102, 4294901760
    %v1474 = vsub.f32 %v102, %v1473
    %v1475 = vand.u32 %v1474, 4294901760
    %1476 = vmatpush.msra.mxu0 %v1475
    %v1477 = vand.u32 %v100, 4294901760
    %v1478 = vsub.f32 %v100, %v1477
    %v1479 = vand.u32 %v1478, 4294901760
    %1480 = vmatpush.msra.mxu0 %v1479
    %v1481 = vand.u32 %v98, 4294901760
    %v1482 = vsub.f32 %v98, %v1481
    %v1483 = vand.u32 %v1482, 4294901760
    %1484 = vmatpush.msra.mxu0 %v1483
    %v1485 = vand.u32 %v65, 4294901760
    %1486 = vmatmul.f32.gmra.mxu0 %v1485
    %v1487 = vpop.f32.mrf.mxu0
    %v1488 = vadd.f32 %v1419, %v1487
    %1489 = vdwg.mxu0
    %v1490 = vand.u32 %v128, 4294901760
    %1491 = vmatpush.msra.mxu0 %v1490
    %v1492 = vand.u32 %v126, 4294901760
    %1493 = vmatpush.msra.mxu0 %v1492
    %v1494 = vand.u32 %v124, 4294901760
    %1495 = vmatpush.msra.mxu0 %v1494
    %v1496 = vand.u32 %v122, 4294901760
    %1497 = vmatpush.msra.mxu0 %v1496
    %v1498 = vand.u32 %v120, 4294901760
    %1499 = vmatpush.msra.mxu0 %v1498
    %v1500 = vand.u32 %v118, 4294901760
    %1501 = vmatpush.msra.mxu0 %v1500
    %v1502 = vand.u32 %v116, 4294901760
    %1503 = vmatpush.msra.mxu0 %v1502
    %v1504 = vand.u32 %v114, 4294901760
    %1505 = vmatpush.msra.mxu0 %v1504
    %v1506 = vand.u32 %v112, 4294901760
    %1507 = vmatpush.msra.mxu0 %v1506
    %v1508 = vand.u32 %v110, 4294901760
    %1509 = vmatpush.msra.mxu0 %v1508
    %v1510 = vand.u32 %v108, 4294901760
    %1511 = vmatpush.msra.mxu0 %v1510
    %v1512 = vand.u32 %v106, 4294901760
    %1513 = vmatpush.msra.mxu0 %v1512
    %v1514 = vand.u32 %v104, 4294901760
    %1515 = vmatpush.msra.mxu0 %v1514
    %v1516 = vand.u32 %v102, 4294901760
    %1517 = vmatpush.msra.mxu0 %v1516
    %v1518 = vand.u32 %v100, 4294901760
    %1519 = vmatpush.msra.mxu0 %v1518
    %v1520 = vand.u32 %v98, 4294901760
    %1521 = vmatpush.msra.mxu0 %v1520
    %v1522 = vand.u32 %v65, 4294901760
    %1523 = vmatmul.f32.gmra.mxu0 %v1522
    %v1524 = vpop.f32.mrf.mxu0
    %v1525 = vadd.f32 %v1488, %v1524
    %1526 = vdwg.mxu0
    %v1527 = vand.u32 %v97, 4294901760
    %1528 = vmatpush.msra.mxu0 %v1527
    %v1529 = vand.u32 %v95, 4294901760
    %1530 = vmatpush.msra.mxu0 %v1529
    %v1531 = vand.u32 %v93, 4294901760
    %1532 = vmatpush.msra.mxu0 %v1531
    %v1533 = vand.u32 %v91, 4294901760
    %1534 = vmatpush.msra.mxu0 %v1533
    %v1535 = vand.u32 %v89, 4294901760
    %1536 = vmatpush.msra.mxu0 %v1535
    %v1537 = vand.u32 %v87, 4294901760
    %1538 = vmatpush.msra.mxu0 %v1537
    %v1539 = vand.u32 %v85, 4294901760
    %1540 = vmatpush.msra.mxu0 %v1539
    %v1541 = vand.u32 %v83, 4294901760
    %1542 = vmatpush.msra.mxu0 %v1541
    %v1543 = vand.u32 %v81, 4294901760
    %1544 = vmatpush.msra.mxu0 %v1543
    %v1545 = vand.u32 %v79, 4294901760
    %1546 = vmatpush.msra.mxu0 %v1545
    %v1547 = vand.u32 %v77, 4294901760
    %1548 = vmatpush.msra.mxu0 %v1547
    %v1549 = vand.u32 %v75, 4294901760
    %1550 = vmatpush.msra.mxu0 %v1549
    %v1551 = vand.u32 %v73, 4294901760
    %1552 = vmatpush.msra.mxu0 %v1551
    %v1553 = vand.u32 %v71, 4294901760
    %1554 = vmatpush.msra.mxu0 %v1553
    %v1555 = vand.u32 %v69, 4294901760
    %1556 = vmatpush.msra.mxu0 %v1555
    %v1557 = vand.u32 %v67, 4294901760
    %1558 = vmatpush.msra.mxu0 %v1557
    %v1559 = vand.u32 %v64, 4294901760
    %v1560 = vsub.f32 %v64, %v1559
    %v1561 = vand.u32 %v1560, 4294901760
    %v1562 = vsub.f32 %v1560, %v1561
    %v1563 = vand.u32 %v1562, 4294901760
    %1564 = vmatmul.f32.gmra.mxu0 %v1563
    %v1565 = vpop.f32.mrf.mxu0
    %v1566 = vadd.f32 %v843, %v1565
    %1567 = vdwg.mxu0
    %v1568 = vand.u32 %v97, 4294901760
    %v1569 = vsub.f32 %v97, %v1568
    %v1570 = vand.u32 %v1569, 4294901760
    %v1571 = vsub.f32 %v1569, %v1570
    %v1572 = vand.u32 %v1571, 4294901760
    %1573 = vmatpush.msra.mxu0 %v1572
    %v1574 = vand.u32 %v95, 4294901760
    %v1575 = vsub.f32 %v95, %v1574
    %v1576 = vand.u32 %v1575, 4294901760
    %v1577 = vsub.f32 %v1575, %v1576
    %v1578 = vand.u32 %v1577, 4294901760
    %1579 = vmatpush.msra.mxu0 %v1578
    %v1580 = vand.u32 %v93, 4294901760
    %v1581 = vsub.f32 %v93, %v1580
    %v1582 = vand.u32 %v1581, 4294901760
    %v1583 = vsub.f32 %v1581, %v1582
    %v1584 = vand.u32 %v1583, 4294901760
    %1585 = vmatpush.msra.mxu0 %v1584
    %v1586 = vand.u32 %v91, 4294901760
    %v1587 = vsub.f32 %v91, %v1586
    %v1588 = vand.u32 %v1587, 4294901760
    %v1589 = vsub.f32 %v1587, %v1588
    %v1590 = vand.u32 %v1589, 4294901760
    %1591 = vmatpush.msra.mxu0 %v1590
    %v1592 = vand.u32 %v89, 4294901760
    %v1593 = vsub.f32 %v89, %v1592
    %v1594 = vand.u32 %v1593, 4294901760
    %v1595 = vsub.f32 %v1593, %v1594
    %v1596 = vand.u32 %v1595, 4294901760
    %1597 = vmatpush.msra.mxu0 %v1596
    %v1598 = vand.u32 %v87, 4294901760
    %v1599 = vsub.f32 %v87, %v1598
    %v1600 = vand.u32 %v1599, 4294901760
    %v1601 = vsub.f32 %v1599, %v1600
    %v1602 = vand.u32 %v1601, 4294901760
    %1603 = vmatpush.msra.mxu0 %v1602
    %v1604 = vand.u32 %v85, 4294901760
    %v1605 = vsub.f32 %v85, %v1604
    %v1606 = vand.u32 %v1605, 4294901760
    %v1607 = vsub.f32 %v1605, %v1606
    %v1608 = vand.u32 %v1607, 4294901760
    %1609 = vmatpush.msra.mxu0 %v1608
    %v1610 = vand.u32 %v83, 4294901760
    %v1611 = vsub.f32 %v83, %v1610
    %v1612 = vand.u32 %v1611, 4294901760
    %v1613 = vsub.f32 %v1611, %v1612
    %v1614 = vand.u32 %v1613, 4294901760
    %1615 = vmatpush.msra.mxu0 %v1614
    %v1616 = vand.u32 %v81, 4294901760
    %v1617 = vsub.f32 %v81, %v1616
    %v1618 = vand.u32 %v1617, 4294901760
    %v1619 = vsub.f32 %v1617, %v1618
    %v1620 = vand.u32 %v1619, 4294901760
    %1621 = vmatpush.msra.mxu0 %v1620
    %v1622 = vand.u32 %v79, 4294901760
    %v1623 = vsub.f32 %v79, %v1622
    %v1624 = vand.u32 %v1623, 4294901760
    %v1625 = vsub.f32 %v1623, %v1624
    %v1626 = vand.u32 %v1625, 4294901760
    %1627 = vmatpush.msra.mxu0 %v1626
    %v1628 = vand.u32 %v77, 4294901760
    %v1629 = vsub.f32 %v77, %v1628
    %v1630 = vand.u32 %v1629, 4294901760
    %v1631 = vsub.f32 %v1629, %v1630
    %v1632 = vand.u32 %v1631, 4294901760
    %1633 = vmatpush.msra.mxu0 %v1632
    %v1634 = vand.u32 %v75, 4294901760
    %v1635 = vsub.f32 %v75, %v1634
    %v1636 = vand.u32 %v1635, 4294901760
    %v1637 = vsub.f32 %v1635, %v1636
    %v1638 = vand.u32 %v1637, 4294901760
    %1639 = vmatpush.msra.mxu0 %v1638
    %v1640 = vand.u32 %v73, 4294901760
    %v1641 = vsub.f32 %v73, %v1640
    %v1642 = vand.u32 %v1641, 4294901760
    %v1643 = vsub.f32 %v1641, %v1642
    %v1644 = vand.u32 %v1643, 4294901760
    %1645 = vmatpush.msra.mxu0 %v1644
    %v1646 = vand.u32 %v71, 4294901760
    %v1647 = vsub.f32 %v71, %v1646
    %v1648 = vand.u32 %v1647, 4294901760
    %v1649 = vsub.f32 %v1647, %v1648
    %v1650 = vand.u32 %v1649, 4294901760
    %1651 = vmatpush.msra.mxu0 %v1650
    %v1652 = vand.u32 %v69, 4294901760
    %v1653 = vsub.f32 %v69, %v1652
    %v1654 = vand.u32 %v1653, 4294901760
    %v1655 = vsub.f32 %v1653, %v1654
    %v1656 = vand.u32 %v1655, 4294901760
    %1657 = vmatpush.msra.mxu0 %v1656
    %v1658 = vand.u32 %v67, 4294901760
    %v1659 = vsub.f32 %v67, %v1658
    %v1660 = vand.u32 %v1659, 4294901760
    %v1661 = vsub.f32 %v1659, %v1660
    %v1662 = vand.u32 %v1661, 4294901760
    %1663 = vmatpush.msra.mxu0 %v1662
    %v1664 = vand.u32 %v64, 4294901760
    %1665 = vmatmul.f32.gmra.mxu0 %v1664
    %v1666 = vpop.f32.mrf.mxu0
    %v1667 = vadd.f32 %v1566, %v1666
    %1668 = vdwg.mxu0
    %v1669 = vand.u32 %v97, 4294901760
    %v1670 = vsub.f32 %v97, %v1669
    %1671 = vmatpush.msra.mxu0 %v1670
    %v1672 = vand.u32 %v95, 4294901760
    %v1673 = vsub.f32 %v95, %v1672
    %1674 = vmatpush.msra.mxu0 %v1673
    %v1675 = vand.u32 %v93, 4294901760
    %v1676 = vsub.f32 %v93, %v1675
    %1677 = vmatpush.msra.mxu0 %v1676
    %v1678 = vand.u32 %v91, 4294901760
    %v1679 = vsub.f32 %v91, %v1678
    %1680 = vmatpush.msra.mxu0 %v1679
    %v1681 = vand.u32 %v89, 4294901760
    %v1682 = vsub.f32 %v89, %v1681
    %1683 = vmatpush.msra.mxu0 %v1682
    %v1684 = vand.u32 %v87, 4294901760
    %v1685 = vsub.f32 %v87, %v1684
    %1686 = vmatpush.msra.mxu0 %v1685
    %v1687 = vand.u32 %v85, 4294901760
    %v1688 = vsub.f32 %v85, %v1687
    %1689 = vmatpush.msra.mxu0 %v1688
    %v1690 = vand.u32 %v83, 4294901760
    %v1691 = vsub.f32 %v83, %v1690
    %1692 = vmatpush.msra.mxu0 %v1691
    %v1693 = vand.u32 %v81, 4294901760
    %v1694 = vsub.f32 %v81, %v1693
    %1695 = vmatpush.msra.mxu0 %v1694
    %v1696 = vand.u32 %v79, 4294901760
    %v1697 = vsub.f32 %v79, %v1696
    %1698 = vmatpush.msra.mxu0 %v1697
    %v1699 = vand.u32 %v77, 4294901760
    %v1700 = vsub.f32 %v77, %v1699
    %1701 = vmatpush.msra.mxu0 %v1700
    %v1702 = vand.u32 %v75, 4294901760
    %v1703 = vsub.f32 %v75, %v1702
    %1704 = vmatpush.msra.mxu0 %v1703
    %v1705 = vand.u32 %v73, 4294901760
    %v1706 = vsub.f32 %v73, %v1705
    %1707 = vmatpush.msra.mxu0 %v1706
    %v1708 = vand.u32 %v71, 4294901760
    %v1709 = vsub.f32 %v71, %v1708
    %1710 = vmatpush.msra.mxu0 %v1709
    %v1711 = vand.u32 %v69, 4294901760
    %v1712 = vsub.f32 %v69, %v1711
    %1713 = vmatpush.msra.mxu0 %v1712
    %v1714 = vand.u32 %v67, 4294901760
    %v1715 = vsub.f32 %v67, %v1714
    %1716 = vmatpush.msra.mxu0 %v1715
    %v1717 = vand.u32 %v64, 4294901760
    %v1718 = vsub.f32 %v64, %v1717
    %1719 = vmatmul.f32.gmra.mxu0 %v1718
    %v1720 = vpop.f32.mrf.mxu0
    %v1721 = vadd.f32 %v1667, %v1720
    %1722 = vdwg.mxu0
    %v1723 = vand.u32 %v97, 4294901760
    %1724 = vmatpush.msra.mxu0 %v1723
    %v1725 = vand.u32 %v95, 4294901760
    %1726 = vmatpush.msra.mxu0 %v1725
    %v1727 = vand.u32 %v93, 4294901760
    %1728 = vmatpush.msra.mxu0 %v1727
    %v1729 = vand.u32 %v91, 4294901760
    %1730 = vmatpush.msra.mxu0 %v1729
    %v1731 = vand.u32 %v89, 4294901760
    %1732 = vmatpush.msra.mxu0 %v1731
    %v1733 = vand.u32 %v87, 4294901760
    %1734 = vmatpush.msra.mxu0 %v1733
    %v1735 = vand.u32 %v85, 4294901760
    %1736 = vmatpush.msra.mxu0 %v1735
    %v1737 = vand.u32 %v83, 4294901760
    %1738 = vmatpush.msra.mxu0 %v1737
    %v1739 = vand.u32 %v81, 4294901760
    %1740 = vmatpush.msra.mxu0 %v1739
    %v1741 = vand.u32 %v79, 4294901760
    %1742 = vmatpush.msra.mxu0 %v1741
    %v1743 = vand.u32 %v77, 4294901760
    %1744 = vmatpush.msra.mxu0 %v1743
    %v1745 = vand.u32 %v75, 4294901760
    %1746 = vmatpush.msra.mxu0 %v1745
    %v1747 = vand.u32 %v73, 4294901760
    %1748 = vmatpush.msra.mxu0 %v1747
    %v1749 = vand.u32 %v71, 4294901760
    %1750 = vmatpush.msra.mxu0 %v1749
    %v1751 = vand.u32 %v69, 4294901760
    %1752 = vmatpush.msra.mxu0 %v1751
    %v1753 = vand.u32 %v67, 4294901760
    %1754 = vmatpush.msra.mxu0 %v1753
    %v1755 = vand.u32 %v64, 4294901760
    %v1756 = vsub.f32 %v64, %v1755
    %v1757 = vand.u32 %v1756, 4294901760
    %1758 = vmatmul.f32.gmra.mxu0 %v1757
    %v1759 = vpop.f32.mrf.mxu0
    %v1760 = vadd.f32 %v1721, %v1759
    %1761 = vdwg.mxu0
    %v1762 = vand.u32 %v97, 4294901760
    %v1763 = vsub.f32 %v97, %v1762
    %v1764 = vand.u32 %v1763, 4294901760
    %1765 = vmatpush.msra.mxu0 %v1764
    %v1766 = vand.u32 %v95, 4294901760
    %v1767 = vsub.f32 %v95, %v1766
    %v1768 = vand.u32 %v1767, 4294901760
    %1769 = vmatpush.msra.mxu0 %v1768
    %v1770 = vand.u32 %v93, 4294901760
    %v1771 = vsub.f32 %v93, %v1770
    %v1772 = vand.u32 %v1771, 4294901760
    %1773 = vmatpush.msra.mxu0 %v1772
    %v1774 = vand.u32 %v91, 4294901760
    %v1775 = vsub.f32 %v91, %v1774
    %v1776 = vand.u32 %v1775, 4294901760
    %1777 = vmatpush.msra.mxu0 %v1776
    %v1778 = vand.u32 %v89, 4294901760
    %v1779 = vsub.f32 %v89, %v1778
    %v1780 = vand.u32 %v1779, 4294901760
    %1781 = vmatpush.msra.mxu0 %v1780
    %v1782 = vand.u32 %v87, 4294901760
    %v1783 = vsub.f32 %v87, %v1782
    %v1784 = vand.u32 %v1783, 4294901760
    %1785 = vmatpush.msra.mxu0 %v1784
    %v1786 = vand.u32 %v85, 4294901760
    %v1787 = vsub.f32 %v85, %v1786
    %v1788 = vand.u32 %v1787, 4294901760
    %1789 = vmatpush.msra.mxu0 %v1788
    %v1790 = vand.u32 %v83, 4294901760
    %v1791 = vsub.f32 %v83, %v1790
    %v1792 = vand.u32 %v1791, 4294901760
    %1793 = vmatpush.msra.mxu0 %v1792
    %v1794 = vand.u32 %v81, 4294901760
    %v1795 = vsub.f32 %v81, %v1794
    %v1796 = vand.u32 %v1795, 4294901760
    %1797 = vmatpush.msra.mxu0 %v1796
    %v1798 = vand.u32 %v79, 4294901760
    %v1799 = vsub.f32 %v79, %v1798
    %v1800 = vand.u32 %v1799, 4294901760
    %1801 = vmatpush.msra.mxu0 %v1800
    %v1802 = vand.u32 %v77, 4294901760
    %v1803 = vsub.f32 %v77, %v1802
    %v1804 = vand.u32 %v1803, 4294901760
    %1805 = vmatpush.msra.mxu0 %v1804
    %v1806 = vand.u32 %v75, 4294901760
    %v1807 = vsub.f32 %v75, %v1806
    %v1808 = vand.u32 %v1807, 4294901760
    %1809 = vmatpush.msra.mxu0 %v1808
    %v1810 = vand.u32 %v73, 4294901760
    %v1811 = vsub.f32 %v73, %v1810
    %v1812 = vand.u32 %v1811, 4294901760
    %1813 = vmatpush.msra.mxu0 %v1812
    %v1814 = vand.u32 %v71, 4294901760
    %v1815 = vsub.f32 %v71, %v1814
    %v1816 = vand.u32 %v1815, 4294901760
    %1817 = vmatpush.msra.mxu0 %v1816
    %v1818 = vand.u32 %v69, 4294901760
    %v1819 = vsub.f32 %v69, %v1818
    %v1820 = vand.u32 %v1819, 4294901760
    %1821 = vmatpush.msra.mxu0 %v1820
    %v1822 = vand.u32 %v67, 4294901760
    %v1823 = vsub.f32 %v67, %v1822
    %v1824 = vand.u32 %v1823, 4294901760
    %1825 = vmatpush.msra.mxu0 %v1824
    %v1826 = vand.u32 %v64, 4294901760
    %1827 = vmatmul.f32.gmra.mxu0 %v1826
    %v1828 = vpop.f32.mrf.mxu0
    %v1829 = vadd.f32 %v1760, %v1828
    %1830 = vdwg.mxu0
    %v1831 = vand.u32 %v97, 4294901760
    %1832 = vmatpush.msra.mxu0 %v1831
    %v1833 = vand.u32 %v95, 4294901760
    %1834 = vmatpush.msra.mxu0 %v1833
    %v1835 = vand.u32 %v93, 4294901760
    %1836 = vmatpush.msra.mxu0 %v1835
    %v1837 = vand.u32 %v91, 4294901760
    %1838 = vmatpush.msra.mxu0 %v1837
    %v1839 = vand.u32 %v89, 4294901760
    %1840 = vmatpush.msra.mxu0 %v1839
    %v1841 = vand.u32 %v87, 4294901760
    %1842 = vmatpush.msra.mxu0 %v1841
    %v1843 = vand.u32 %v85, 4294901760
    %1844 = vmatpush.msra.mxu0 %v1843
    %v1845 = vand.u32 %v83, 4294901760
    %1846 = vmatpush.msra.mxu0 %v1845
    %v1847 = vand.u32 %v81, 4294901760
    %1848 = vmatpush.msra.mxu0 %v1847
    %v1849 = vand.u32 %v79, 4294901760
    %1850 = vmatpush.msra.mxu0 %v1849
    %v1851 = vand.u32 %v77, 4294901760
    %1852 = vmatpush.msra.mxu0 %v1851
    %v1853 = vand.u32 %v75, 4294901760
    %1854 = vmatpush.msra.mxu0 %v1853
    %v1855 = vand.u32 %v73, 4294901760
    %1856 = vmatpush.msra.mxu0 %v1855
    %v1857 = vand.u32 %v71, 4294901760
    %1858 = vmatpush.msra.mxu0 %v1857
    %v1859 = vand.u32 %v69, 4294901760
    %1860 = vmatpush.msra.mxu0 %v1859
    %v1861 = vand.u32 %v67, 4294901760
    %1862 = vmatpush.msra.mxu0 %v1861
    %v1863 = vand.u32 %v64, 4294901760
    %1864 = vmatmul.f32.gmra.mxu0 %v1863
    %v1865 = vpop.f32.mrf.mxu0
    %v1866 = vadd.f32 %v1829, %v1865
    %1867 = vdwg.mxu0
    %v1868 = vand.u32 %v129, 4294901760
    %1869 = vmatpush.msra.mxu0 %v1868
    %v1870 = vand.u32 %v127, 4294901760
    %1871 = vmatpush.msra.mxu0 %v1870
    %v1872 = vand.u32 %v125, 4294901760
    %1873 = vmatpush.msra.mxu0 %v1872
    %v1874 = vand.u32 %v123, 4294901760
    %1875 = vmatpush.msra.mxu0 %v1874
    %v1876 = vand.u32 %v121, 4294901760
    %1877 = vmatpush.msra.mxu0 %v1876
    %v1878 = vand.u32 %v119, 4294901760
    %1879 = vmatpush.msra.mxu0 %v1878
    %v1880 = vand.u32 %v117, 4294901760
    %1881 = vmatpush.msra.mxu0 %v1880
    %v1882 = vand.u32 %v115, 4294901760
    %1883 = vmatpush.msra.mxu0 %v1882
    %v1884 = vand.u32 %v113, 4294901760
    %1885 = vmatpush.msra.mxu0 %v1884
    %v1886 = vand.u32 %v111, 4294901760
    %1887 = vmatpush.msra.mxu0 %v1886
    %v1888 = vand.u32 %v109, 4294901760
    %1889 = vmatpush.msra.mxu0 %v1888
    %v1890 = vand.u32 %v107, 4294901760
    %1891 = vmatpush.msra.mxu0 %v1890
    %v1892 = vand.u32 %v105, 4294901760
    %1893 = vmatpush.msra.mxu0 %v1892
    %v1894 = vand.u32 %v103, 4294901760
    %1895 = vmatpush.msra.mxu0 %v1894
    %v1896 = vand.u32 %v101, 4294901760
    %1897 = vmatpush.msra.mxu0 %v1896
    %v1898 = vand.u32 %v99, 4294901760
    %1899 = vmatpush.msra.mxu0 %v1898
    %v1900 = vand.u32 %v65, 4294901760
    %v1901 = vsub.f32 %v65, %v1900
    %v1902 = vand.u32 %v1901, 4294901760
    %v1903 = vsub.f32 %v1901, %v1902
    %v1904 = vand.u32 %v1903, 4294901760
    %1905 = vmatmul.f32.gmra.mxu0 %v1904
    %v1906 = vpop.f32.mrf.mxu0
    %v1907 = vadd.f32 %v1866, %v1906
    %1908 = vdwg.mxu0
    %v1909 = vand.u32 %v129, 4294901760
    %v1910 = vsub.f32 %v129, %v1909
    %v1911 = vand.u32 %v1910, 4294901760
    %v1912 = vsub.f32 %v1910, %v1911
    %v1913 = vand.u32 %v1912, 4294901760
    %1914 = vmatpush.msra.mxu0 %v1913
    %v1915 = vand.u32 %v127, 4294901760
    %v1916 = vsub.f32 %v127, %v1915
    %v1917 = vand.u32 %v1916, 4294901760
    %v1918 = vsub.f32 %v1916, %v1917
    %v1919 = vand.u32 %v1918, 4294901760
    %1920 = vmatpush.msra.mxu0 %v1919
    %v1921 = vand.u32 %v125, 4294901760
    %v1922 = vsub.f32 %v125, %v1921
    %v1923 = vand.u32 %v1922, 4294901760
    %v1924 = vsub.f32 %v1922, %v1923
    %v1925 = vand.u32 %v1924, 4294901760
    %1926 = vmatpush.msra.mxu0 %v1925
    %v1927 = vand.u32 %v123, 4294901760
    %v1928 = vsub.f32 %v123, %v1927
    %v1929 = vand.u32 %v1928, 4294901760
    %v1930 = vsub.f32 %v1928, %v1929
    %v1931 = vand.u32 %v1930, 4294901760
    %1932 = vmatpush.msra.mxu0 %v1931
    %v1933 = vand.u32 %v121, 4294901760
    %v1934 = vsub.f32 %v121, %v1933
    %v1935 = vand.u32 %v1934, 4294901760
    %v1936 = vsub.f32 %v1934, %v1935
    %v1937 = vand.u32 %v1936, 4294901760
    %1938 = vmatpush.msra.mxu0 %v1937
    %v1939 = vand.u32 %v119, 4294901760
    %v1940 = vsub.f32 %v119, %v1939
    %v1941 = vand.u32 %v1940, 4294901760
    %v1942 = vsub.f32 %v1940, %v1941
    %v1943 = vand.u32 %v1942, 4294901760
    %1944 = vmatpush.msra.mxu0 %v1943
    %v1945 = vand.u32 %v117, 4294901760
    %v1946 = vsub.f32 %v117, %v1945
    %v1947 = vand.u32 %v1946, 4294901760
    %v1948 = vsub.f32 %v1946, %v1947
    %v1949 = vand.u32 %v1948, 4294901760
    %1950 = vmatpush.msra.mxu0 %v1949
    %v1951 = vand.u32 %v115, 4294901760
    %v1952 = vsub.f32 %v115, %v1951
    %v1953 = vand.u32 %v1952, 4294901760
    %v1954 = vsub.f32 %v1952, %v1953
    %v1955 = vand.u32 %v1954, 4294901760
    %1956 = vmatpush.msra.mxu0 %v1955
    %v1957 = vand.u32 %v113, 4294901760
    %v1958 = vsub.f32 %v113, %v1957
    %v1959 = vand.u32 %v1958, 4294901760
    %v1960 = vsub.f32 %v1958, %v1959
    %v1961 = vand.u32 %v1960, 4294901760
    %1962 = vmatpush.msra.mxu0 %v1961
    %v1963 = vand.u32 %v111, 4294901760
    %v1964 = vsub.f32 %v111, %v1963
    %v1965 = vand.u32 %v1964, 4294901760
    %v1966 = vsub.f32 %v1964, %v1965
    %v1967 = vand.u32 %v1966, 4294901760
    %1968 = vmatpush.msra.mxu0 %v1967
    %v1969 = vand.u32 %v109, 4294901760
    %v1970 = vsub.f32 %v109, %v1969
    %v1971 = vand.u32 %v1970, 4294901760
    %v1972 = vsub.f32 %v1970, %v1971
    %v1973 = vand.u32 %v1972, 4294901760
    %1974 = vmatpush.msra.mxu0 %v1973
    %v1975 = vand.u32 %v107, 4294901760
    %v1976 = vsub.f32 %v107, %v1975
    %v1977 = vand.u32 %v1976, 4294901760
    %v1978 = vsub.f32 %v1976, %v1977
    %v1979 = vand.u32 %v1978, 4294901760
    %1980 = vmatpush.msra.mxu0 %v1979
    %v1981 = vand.u32 %v105, 4294901760
    %v1982 = vsub.f32 %v105, %v1981
    %v1983 = vand.u32 %v1982, 4294901760
    %v1984 = vsub.f32 %v1982, %v1983
    %v1985 = vand.u32 %v1984, 4294901760
    %1986 = vmatpush.msra.mxu0 %v1985
    %v1987 = vand.u32 %v103, 4294901760
    %v1988 = vsub.f32 %v103, %v1987
    %v1989 = vand.u32 %v1988, 4294901760
    %v1990 = vsub.f32 %v1988, %v1989
    %v1991 = vand.u32 %v1990, 4294901760
    %1992 = vmatpush.msra.mxu0 %v1991
    %v1993 = vand.u32 %v101, 4294901760
    %v1994 = vsub.f32 %v101, %v1993
    %v1995 = vand.u32 %v1994, 4294901760
    %v1996 = vsub.f32 %v1994, %v1995
    %v1997 = vand.u32 %v1996, 4294901760
    %1998 = vmatpush.msra.mxu0 %v1997
    %v1999 = vand.u32 %v99, 4294901760
    %v2000 = vsub.f32 %v99, %v1999
    %v2001 = vand.u32 %v2000, 4294901760
    %v2002 = vsub.f32 %v2000, %v2001
    %v2003 = vand.u32 %v2002, 4294901760
    %2004 = vmatpush.msra.mxu0 %v2003
    %v2005 = vand.u32 %v65, 4294901760
    %2006 = vmatmul.f32.gmra.mxu0 %v2005
    %v2007 = vpop.f32.mrf.mxu0
    %v2008 = vadd.f32 %v1907, %v2007
    %2009 = vdwg.mxu0
    %v2010 = vand.u32 %v129, 4294901760
    %v2011 = vsub.f32 %v129, %v2010
    %2012 = vmatpush.msra.mxu0 %v2011
    %v2013 = vand.u32 %v127, 4294901760
    %v2014 = vsub.f32 %v127, %v2013
    %2015 = vmatpush.msra.mxu0 %v2014
    %v2016 = vand.u32 %v125, 4294901760
    %v2017 = vsub.f32 %v125, %v2016
    %2018 = vmatpush.msra.mxu0 %v2017
    %v2019 = vand.u32 %v123, 4294901760
    %v2020 = vsub.f32 %v123, %v2019
    %2021 = vmatpush.msra.mxu0 %v2020
    %v2022 = vand.u32 %v121, 4294901760
    %v2023 = vsub.f32 %v121, %v2022
    %2024 = vmatpush.msra.mxu0 %v2023
    %v2025 = vand.u32 %v119, 4294901760
    %v2026 = vsub.f32 %v119, %v2025
    %2027 = vmatpush.msra.mxu0 %v2026
    %v2028 = vand.u32 %v117, 4294901760
    %v2029 = vsub.f32 %v117, %v2028
    %2030 = vmatpush.msra.mxu0 %v2029
    %v2031 = vand.u32 %v115, 4294901760
    %v2032 = vsub.f32 %v115, %v2031
    %2033 = vmatpush.msra.mxu0 %v2032
    %v2034 = vand.u32 %v113, 4294901760
    %v2035 = vsub.f32 %v113, %v2034
    %2036 = vmatpush.msra.mxu0 %v2035
    %v2037 = vand.u32 %v111, 4294901760
    %v2038 = vsub.f32 %v111, %v2037
    %2039 = vmatpush.msra.mxu0 %v2038
    %v2040 = vand.u32 %v109, 4294901760
    %v2041 = vsub.f32 %v109, %v2040
    %2042 = vmatpush.msra.mxu0 %v2041
    %v2043 = vand.u32 %v107, 4294901760
    %v2044 = vsub.f32 %v107, %v2043
    %2045 = vmatpush.msra.mxu0 %v2044
    %v2046 = vand.u32 %v105, 4294901760
    %v2047 = vsub.f32 %v105, %v2046
    %2048 = vmatpush.msra.mxu0 %v2047
    %v2049 = vand.u32 %v103, 4294901760
    %v2050 = vsub.f32 %v103, %v2049
    %2051 = vmatpush.msra.mxu0 %v2050
    %v2052 = vand.u32 %v101, 4294901760
    %v2053 = vsub.f32 %v101, %v2052
    %2054 = vmatpush.msra.mxu0 %v2053
    %v2055 = vand.u32 %v99, 4294901760
    %v2056 = vsub.f32 %v99, %v2055
    %2057 = vmatpush.msra.mxu0 %v2056
    %v2058 = vand.u32 %v65, 4294901760
    %v2059 = vsub.f32 %v65, %v2058
    %2060 = vmatmul.f32.gmra.mxu0 %v2059
    %v2061 = vpop.f32.mrf.mxu0
    %v2062 = vadd.f32 %v2008, %v2061
    %2063 = vdwg.mxu0
    %v2064 = vand.u32 %v129, 4294901760
    %2065 = vmatpush.msra.mxu0 %v2064
    %v2066 = vand.u32 %v127, 4294901760
    %2067 = vmatpush.msra.mxu0 %v2066
    %v2068 = vand.u32 %v125, 4294901760
    %2069 = vmatpush.msra.mxu0 %v2068
    %v2070 = vand.u32 %v123, 4294901760
    %2071 = vmatpush.msra.mxu0 %v2070
    %v2072 = vand.u32 %v121, 4294901760
    %2073 = vmatpush.msra.mxu0 %v2072
    %v2074 = vand.u32 %v119, 4294901760
    %2075 = vmatpush.msra.mxu0 %v2074
    %v2076 = vand.u32 %v117, 4294901760
    %2077 = vmatpush.msra.mxu0 %v2076
    %v2078 = vand.u32 %v115, 4294901760
    %2079 = vmatpush.msra.mxu0 %v2078
    %v2080 = vand.u32 %v113, 4294901760
    %2081 = vmatpush.msra.mxu0 %v2080
    %v2082 = vand.u32 %v111, 4294901760
    %2083 = vmatpush.msra.mxu0 %v2082
    %v2084 = vand.u32 %v109, 4294901760
    %2085 = vmatpush.msra.mxu0 %v2084
    %v2086 = vand.u32 %v107, 4294901760
    %2087 = vmatpush.msra.mxu0 %v2086
    %v2088 = vand.u32 %v105, 4294901760
    %2089 = vmatpush.msra.mxu0 %v2088
    %v2090 = vand.u32 %v103, 4294901760
    %2091 = vmatpush.msra.mxu0 %v2090
    %v2092 = vand.u32 %v101, 4294901760
    %2093 = vmatpush.msra.mxu0 %v2092
    %v2094 = vand.u32 %v99, 4294901760
    %2095 = vmatpush.msra.mxu0 %v2094
    %v2096 = vand.u32 %v65, 4294901760
    %v2097 = vsub.f32 %v65, %v2096
    %v2098 = vand.u32 %v2097, 4294901760
    %2099 = vmatmul.f32.gmra.mxu0 %v2098
    %v2100 = vpop.f32.mrf.mxu0
    %v2101 = vadd.f32 %v2062, %v2100
    %2102 = vdwg.mxu0
    %v2103 = vand.u32 %v129, 4294901760
    %v2104 = vsub.f32 %v129, %v2103
    %v2105 = vand.u32 %v2104, 4294901760
    %2106 = vmatpush.msra.mxu0 %v2105
    %v2107 = vand.u32 %v127, 4294901760
    %v2108 = vsub.f32 %v127, %v2107
    %v2109 = vand.u32 %v2108, 4294901760
    %2110 = vmatpush.msra.mxu0 %v2109
    %v2111 = vand.u32 %v125, 4294901760
    %v2112 = vsub.f32 %v125, %v2111
    %v2113 = vand.u32 %v2112, 4294901760
    %2114 = vmatpush.msra.mxu0 %v2113
    %v2115 = vand.u32 %v123, 4294901760
    %v2116 = vsub.f32 %v123, %v2115
    %v2117 = vand.u32 %v2116, 4294901760
    %2118 = vmatpush.msra.mxu0 %v2117
    %v2119 = vand.u32 %v121, 4294901760
    %v2120 = vsub.f32 %v121, %v2119
    %v2121 = vand.u32 %v2120, 4294901760
    %2122 = vmatpush.msra.mxu0 %v2121
    %v2123 = vand.u32 %v119, 4294901760
    %v2124 = vsub.f32 %v119, %v2123
    %v2125 = vand.u32 %v2124, 4294901760
    %2126 = vmatpush.msra.mxu0 %v2125
    %v2127 = vand.u32 %v117, 4294901760
    %v2128 = vsub.f32 %v117, %v2127
    %v2129 = vand.u32 %v2128, 4294901760
    %2130 = vmatpush.msra.mxu0 %v2129
    %v2131 = vand.u32 %v115, 4294901760
    %v2132 = vsub.f32 %v115, %v2131
    %v2133 = vand.u32 %v2132, 4294901760
    %2134 = vmatpush.msra.mxu0 %v2133
    %v2135 = vand.u32 %v113, 4294901760
    %v2136 = vsub.f32 %v113, %v2135
    %v2137 = vand.u32 %v2136, 4294901760
    %2138 = vmatpush.msra.mxu0 %v2137
    %v2139 = vand.u32 %v111, 4294901760
    %v2140 = vsub.f32 %v111, %v2139
    %v2141 = vand.u32 %v2140, 4294901760
    %2142 = vmatpush.msra.mxu0 %v2141
    %v2143 = vand.u32 %v109, 4294901760
    %v2144 = vsub.f32 %v109, %v2143
    %v2145 = vand.u32 %v2144, 4294901760
    %2146 = vmatpush.msra.mxu0 %v2145
    %v2147 = vand.u32 %v107, 4294901760
    %v2148 = vsub.f32 %v107, %v2147
    %v2149 = vand.u32 %v2148, 4294901760
    %2150 = vmatpush.msra.mxu0 %v2149
    %v2151 = vand.u32 %v105, 4294901760
    %v2152 = vsub.f32 %v105, %v2151
    %v2153 = vand.u32 %v2152, 4294901760
    %2154 = vmatpush.msra.mxu0 %v2153
    %v2155 = vand.u32 %v103, 4294901760
    %v2156 = vsub.f32 %v103, %v2155
    %v2157 = vand.u32 %v2156, 4294901760
    %2158 = vmatpush.msra.mxu0 %v2157
    %v2159 = vand.u32 %v101, 4294901760
    %v2160 = vsub.f32 %v101, %v2159
    %v2161 = vand.u32 %v2160, 4294901760
    %2162 = vmatpush.msra.mxu0 %v2161
    %v2163 = vand.u32 %v99, 4294901760
    %v2164 = vsub.f32 %v99, %v2163
    %v2165 = vand.u32 %v2164, 4294901760
    %2166 = vmatpush.msra.mxu0 %v2165
    %v2167 = vand.u32 %v65, 4294901760
    %2168 = vmatmul.f32.gmra.mxu0 %v2167
    %v2169 = vpop.f32.mrf.mxu0
    %v2170 = vadd.f32 %v2101, %v2169
    %2171 = vdwg.mxu0
    %v2172 = vand.u32 %v129, 4294901760
    %2173 = vmatpush.msra.mxu0 %v2172
    %v2174 = vand.u32 %v127, 4294901760
    %2175 = vmatpush.msra.mxu0 %v2174
    %v2176 = vand.u32 %v125, 4294901760
    %2177 = vmatpush.msra.mxu0 %v2176
    %v2178 = vand.u32 %v123, 4294901760
    %2179 = vmatpush.msra.mxu0 %v2178
    %v2180 = vand.u32 %v121, 4294901760
    %2181 = vmatpush.msra.mxu0 %v2180
    %v2182 = vand.u32 %v119, 4294901760
    %2183 = vmatpush.msra.mxu0 %v2182
    %v2184 = vand.u32 %v117, 4294901760
    %2185 = vmatpush.msra.mxu0 %v2184
    %v2186 = vand.u32 %v115, 4294901760
    %2187 = vmatpush.msra.mxu0 %v2186
    %v2188 = vand.u32 %v113, 4294901760
    %2189 = vmatpush.msra.mxu0 %v2188
    %v2190 = vand.u32 %v111, 4294901760
    %2191 = vmatpush.msra.mxu0 %v2190
    %v2192 = vand.u32 %v109, 4294901760
    %2193 = vmatpush.msra.mxu0 %v2192
    %v2194 = vand.u32 %v107, 4294901760
    %2195 = vmatpush.msra.mxu0 %v2194
    %v2196 = vand.u32 %v105, 4294901760
    %2197 = vmatpush.msra.mxu0 %v2196
    %v2198 = vand.u32 %v103, 4294901760
    %2199 = vmatpush.msra.mxu0 %v2198
    %v2200 = vand.u32 %v101, 4294901760
    %2201 = vmatpush.msra.mxu0 %v2200
    %v2202 = vand.u32 %v99, 4294901760
    %2203 = vmatpush.msra.mxu0 %v2202
    %v2204 = vand.u32 %v65, 4294901760
    %2205 = vmatmul.f32.gmra.mxu0 %v2204
    %v2206 = vpop.f32.mrf.mxu0
    %v2207 = vadd.f32 %v2170, %v2206
    %2208 = vdwg.mxu0
    %2209 = vst [vmem:[#allocation8] sm:$0xff] %v1525
    %2210 = vst [vmem:[#allocation8 + $0x8] sm:$0xff] %v2207
    // Predicated region
    $region26: #{tpu_custom_call.1} parent=1 // pred_check
      _
    $region27: #{tpu_custom_call.1} parent=1 // pred_check_branch
      %2212 = sbr.rel (0) target = $region29
    $region28: #{tpu_custom_call.1} parent=1 // pred_region
      %2214 = vsyncadd [#allocation4], 0
      %s2216 = sshll.u32 [#allocation8], 4
      %s2217 = int_to_ptr.vmem [resolvable:$true] %s2216
      %s2218 = sshll.u32 %s3, 4
      %s2219 = int_to_ptr.hbm [resolvable:$true] %s2218
      %2221 = dma.vmem_to_hbm [thread:$0]  %s2217, 256, %s2219, [#allocation4]
    $region29: #{tpu_custom_call.1} parent=1 // pred_fallthru
      _
    // Predicated region
    $region30: #{tpu_custom_call.1} parent=1 // pred_check
      _
    $region31: #{tpu_custom_call.1} parent=1 // pred_check_branch
      %2223 = sbr.rel (0) target = $region33
    $region32: #{tpu_custom_call.1} parent=1 // pred_region
      %2225 = dma.done [#allocation4], 256
    $region33: #{tpu_custom_call.1} parent=1 // pred_fallthru
      _
    %2226 = vsyncpa [#allocation3], 1
    %2227 = vsyncpa [#allocation6], 1
    %2228 = vsyncpa [#allocation4], 1

</llo_original>
